<compile_context>
chip_gen: v5e
topology: v5e:2x2
jax: 0.10.0
libtpu: 0.0.40
codegen_flags: <defaults>
</compile_context>

<pallas_src>
import functools

import jax
import jax.numpy as jnp
import numpy as np
from jax.experimental import pallas as pl
from jax.experimental.pallas import tpu as pltpu

N_FILTERS = 50
KERNEL_SIZES = (2, 3, 5)
LEFT_PADS = (0, 1, 2)            # PyTorch 'same': left pad = (k-1)//2 (asymmetric for even k)
PAD = 2                          # max margin needed (k=5)
NUM_TAPS = 2 * PAD + 1           # 5 shifted taps cover all three convs
NUM_SPANS = 3
K_TRUE = len(KERNEL_SIZES) * N_FILTERS       # 150
K_PAD = 256                                  # filter dim zero-padded to a lane multiple
HEAD_PAD = ((2 * NUM_SPANS + 7) // 8) * 8    # p/q head dim padded 6 -> 8 (sublane aligned)
EPS = 1e-8


def imdb_kernel(x_ref, mask_s_ref, mask_t_ref, csum_ref, rcsum_ref,
                wconv_ref, bconv_ref, wpq_ref, bpq_ref, wo_ref, bo_ref,
                y_ref, r_ref):
    TB, ns, S = r_ref.shape
    R = TB * S
    D = x_ref.shape[-1]
    KP = wconv_ref.shape[-1]
    HP = wpq_ref.shape[-1]

    mask_s = mask_s_ref[...].reshape(R, 1)                 # (R, 1)   seq on sublanes
    mask_t = mask_t_ref[...]                               # (TB, 1, S) seq on lanes

    # ---- Conv bank (k=2,3,5, padding='same'): 5 shifted taps, accumulated ----
    # x_ref holds the zero-padded embeddings once; no 5x im2col HBM traffic.
    x = x_ref[...]                                         # (TB, S + 2*PAD, D)
    E = jnp.dot(x[:, 0:S, :].reshape(R, D), wconv_ref[0:D, :],
                preferred_element_type=jnp.float32)        # tap 0
    for o in range(1, NUM_TAPS):                           # static unroll, taps 1..4
        tap = x[:, o:o + S, :].reshape(R, D)
        E = E + jnp.dot(tap, wconv_ref[o * D:(o + 1) * D, :],
                        preferred_element_type=jnp.float32)
    E = jnp.maximum(E + bconv_ref[...], 0.0)               # bias + ReLU
    # nn.Dropout(0.5): identity in eval mode.
    E = E * mask_s                                         # (R, KP)

    # ---- SpanPredict: fused p/q heads, masked softmax with S on the lane axis ----
    pq_log = jnp.dot(E, wpq_ref[...],
                     preferred_element_type=jnp.float32) + bpq_ref[...]   # (R, HP)
    pq_t = jnp.swapaxes(pq_log.reshape(TB, S, HP), 1, 2)                  # (TB, HP, S)
    pq_t = jnp.where(mask_t > 0.0, pq_t, jnp.float32(-1e30))
    mx = jnp.max(pq_t, axis=-1, keepdims=True)
    ex = jnp.exp(pq_t - mx) * mask_t
    den = jnp.sum(ex, axis=-1, keepdims=True)
    pq_t = ex * pl.reciprocal(den + EPS, approx=False)     # exact (keeps f32 tolerance)

    # cumsum(p) / reverse-cumsum(q) as (TB*HP, S) @ (S, S) triangular matmuls.
    # HP = 8 keeps the sublane merge tile-aligned; the two padded junk head
    # rows round into the same MXU tiles (no extra cost) and are sliced away.
    pq2 = pq_t.reshape(TB * HP, S)
    a = jnp.dot(pq2, csum_ref[...], preferred_element_type=jnp.float32)
    b = jnp.dot(pq2, rcsum_ref[...], preferred_element_type=jnp.float32)
    a3 = a.reshape(TB, HP, S)
    b3 = b.reshape(TB, HP, S)
    r_t = a3[:, :ns, :] * b3[:, ns:2 * ns, :]              # (TB, ns, S): a_p * b_q
    rden = jnp.sum(r_t, axis=-1, keepdims=True)
    r_t = r_t * pl.reciprocal(rden + EPS, approx=False)
    r_ref[...] = r_t                                       # lane-dense store (S on lanes)

    # ---- span-weighted max pooling + single fused output-head matmul ----
    E3 = E.reshape(TB, S, KP)
    r_seq = jnp.swapaxes(r_t, 1, 2)                        # (TB, S, ns)
    pooled = [jnp.max(E3 * r_seq[:, :, i:i + 1], axis=1) for i in range(ns)]  # (TB, KP)
    m_all = jnp.concatenate(pooled, axis=0)                # (ns*TB, KP)
    z = jnp.tanh(jnp.dot(m_all, wo_ref[...],
                         preferred_element_type=jnp.float32) + bo_ref[...])   # (ns*TB, 1)
    y = z[0:TB, :]
    for i in range(1, ns):                                 # static unroll over spans
        y = y + z[i * TB:(i + 1) * TB, :]
    y_ref[...] = y                                         # (TB, 1)


def _pick_batch_tile(B, S, D, KP):
    """Largest batch tile whose per-step working set fits ~24 MiB of VMEM
    (safe under v7x's 64 MiB); prefers >=2 grid steps (v7x megacore +
    pipelining) when the per-step MXU M dimension stays reasonably full."""
    budget = 24 * 1024 * 1024

    def step_bytes(tb):
        x_blk = 2 * tb * (S + 2 * PAD) * D * 4             # double-buffered input block
        inter = 4 * tb * S * KP * 4                        # E + matmul / pooling temps
        outs = 2 * tb * (NUM_SPANS * S + 1) * 4            # double-buffered outputs
        return x_blk + inter + outs

    # Keep y's (TB, 1) out-block legal: TB == B or TB a multiple of 8.
    cands = [d for d in range(1, B + 1) if B % d == 0 and (d == B or d % 8 == 0)]
    fits = [d for d in cands if step_bytes(d) <= budget] or [min(cands)]
    multi = [d for d in fits if B // d >= 2 and d * S >= 256]
    return max(multi) if multi else max(fits)


@functools.partial(jax.jit, static_argnames=("batch_tile",))
def imdb_forward(x_masked, mask, wconv, bconv, wpq, bpq, wo, bo, *, batch_tile=None):
    B, S, D = x_masked.shape
    KP = wconv.shape[1]
    HP = wpq.shape[1]
    ns = NUM_SPANS
    TB = _pick_batch_tile(B, S, D, KP) if batch_tile is None else batch_tile
    assert B % TB == 0 and (TB == B or TB % 8 == 0)
    nt = B // TB

    # Padded embeddings passed ONCE (the 5 conv taps are sliced in-kernel).
    x_pad = jnp.pad(x_masked, ((0, 0), (PAD, PAD), (0, 0)))        # (B, S+4, D)
    mask_s = mask[:, :, None]                                      # (B, S, 1)
    mask_t = mask[:, None, :]                                      # (B, 1, S)

    # Per-batch (S, S) triangular constants (right-multiplied, S on lanes).
    sidx = jnp.arange(S)
    csum_mat = (sidx[:, None] <= sidx[None, :]).astype(jnp.float32)    # cumsum
    rcsum_mat = (sidx[:, None] >= sidx[None, :]).astype(jnp.float32)   # reverse cumsum

    const = lambda shape: pl.BlockSpec(shape, lambda t: (0,) * len(shape))
    y, r_t = pl.pallas_call(
        imdb_kernel,
        out_shape=(jax.ShapeDtypeStruct((B, 1), jnp.float32),
                   jax.ShapeDtypeStruct((B, ns, S), jnp.float32)),
        grid_spec=pltpu.PrefetchScalarGridSpec(
            num_scalar_prefetch=0,
            grid=(nt,),
            in_specs=[
                pl.BlockSpec((TB, S + 2 * PAD, D), lambda t: (t, 0, 0)),   # padded x
                pl.BlockSpec((TB, S, 1), lambda t: (t, 0, 0)),             # mask (seq on sublanes)
                pl.BlockSpec((TB, 1, S), lambda t: (t, 0, 0)),             # mask (seq on lanes)
                const((S, S)),                                             # cumsum matrix
                const((S, S)),                                             # reverse-cumsum matrix
                const((NUM_TAPS * D, KP)),                                 # packed conv weights
                const((1, KP)),                                            # conv bias
                const((KP, HP)),                                           # fused p/q weights
                const((1, HP)),                                            # fused p/q bias
                const((KP, 1)),                                            # output weight
                const((1, 1)),                                             # output bias
            ],
            out_specs=[
                pl.BlockSpec((TB, 1), lambda t: (t, 0)),
                pl.BlockSpec((TB, ns, S), lambda t: (t, 0, 0)),
            ],
        ),
        compiler_params=pltpu.CompilerParams(
            dimension_semantics=("parallel",),
            vmem_limit_bytes=48 * 1024 * 1024,
        ),
    )(x_pad, mask_s, mask_t, csum_mat, rcsum_mat, wconv, bconv, wpq, bpq, wo, bo)
    return y, jnp.transpose(r_t, (0, 2, 1))                # y: (B, 1), r: (B, S, ns)


def ref_forward(x_masked, mask, wconv, bconv, wpq, bpq, wo, bo):
    """Pure-JAX reference (per-tap convs, jnp.cumsum scan path)."""
    B, S, D = x_masked.shape
    ns = NUM_SPANS
    w5 = wconv.reshape(NUM_TAPS, D, wconv.shape[1])
    x_pad = jnp.pad(x_masked, ((0, 0), (PAD, PAD), (0, 0)))
    E = sum(jnp.einsum('bsd,dk->bsk', x_pad[:, o:o + S, :], w5[o])
            for o in range(NUM_TAPS)) + bconv[None]
    E = jnp.maximum(E, 0.0) * mask[:, :, None]
    valid = (mask > 0.0)[:, :, None]
    logits = (jnp.einsum('bsk,kh->bsh', E, wpq) + bpq[None])[..., :2 * ns]
    logits = jnp.where(valid, logits, jnp.float32(-1e30))
    pq = jnp.exp(logits - logits.max(1, keepdims=True)) * mask[:, :, None]
    pq = pq / (pq.sum(1, keepdims=True) + EPS)
    p, q = pq[..., :ns], pq[..., ns:]
    a = jnp.cumsum(p, axis=1)
    b = jnp.flip(jnp.cumsum(jnp.flip(q, 1), axis=1), 1)
    r = a * b
    r = r / (r.sum(1, keepdims=True) + EPS)
    M = jnp.max(E[:, :, None, :] * r[:, :, :, None], axis=1)      # (B, ns, K)
    z = jnp.tanh(jnp.einsum('bnk,ko->bno', M, wo) + bo[None])
    return jnp.sum(z, axis=1), r


def make_params(key, embed_dim, ns):
    ks = jax.random.split(key, 11)
    # True Conv1d weights per conv (k, D, 50), packed by tap offset into a
    # (5*D, K_PAD) weight slab (zero-padded filter columns 150..255).
    wconv = np.zeros((NUM_TAPS, embed_dim, K_PAD), np.float32)
    bconv = np.zeros((1, K_PAD), np.float32)
    for c, (ksz, lpad) in enumerate(zip(KERNEL_SIZES, LEFT_PADS)):
        w_c = 0.1 * jax.random.normal(ks[c], (ksz, embed_dim, N_FILTERS), jnp.float32)
        b_c = 0.1 * jax.random.normal(ks[3 + c], (N_FILTERS,), jnp.float32)
        for j in range(ksz):
            off = PAD + j - lpad
            wconv[off, :, c * N_FILTERS:(c + 1) * N_FILTERS] = np.asarray(w_c[j])
        bconv[0, c * N_FILTERS:(c + 1) * N_FILTERS] = np.asarray(b_c)
    wconv = wconv.reshape(NUM_TAPS * embed_dim, K_PAD)
    # Fused SpanPredict p/q linears; head dim padded 2*ns -> HEAD_PAD.
    wpq = np.zeros((K_PAD, HEAD_PAD), np.float32)
    bpq = np.zeros((1, HEAD_PAD), np.float32)
    wpq[:K_TRUE, :ns] = np.asarray(0.1 * jax.random.normal(ks[6], (K_TRUE, ns), jnp.float32))
    wpq[:K_TRUE, ns:2 * ns] = np.asarray(0.1 * jax.random.normal(ks[7], (K_TRUE, ns), jnp.float32))
    bpq[0, :2 * ns] = np.asarray(0.1 * jax.random.normal(ks[8], (2 * ns,), jnp.float32))
    wo = np.zeros((K_PAD, 1), np.float32)
    wo[:K_TRUE] = np.asarray(0.1 * jax.random.normal(ks[9], (K_TRUE, 1), jnp.float32))
    bo = 0.1 * jax.random.normal(ks[10], (1, 1), jnp.float32)
    return (jnp.asarray(wconv), jnp.asarray(bconv), jnp.asarray(wpq),
            jnp.asarray(bpq), jnp.asarray(wo), jnp.asarray(bo))


if __name__ == "__main__":
    B, S, D, V = 2, 16, 32, 100
    key = jax.random.PRNGKey(0)
    k_emb, k_ids, k_par = jax.random.split(key, 3)

    embedding_matrix = jax.random.normal(k_emb, (V, D), jnp.float32)
    token_ids = jax.random.randint(k_ids, (B, S), 0, V)
    token_mask = np.ones((B, S), np.float32)
    token_mask[1, 12:] = 0.0                   # exercise masking
    token_mask = jnp.asarray(token_mask)

    params = make_params(k_par, D, NUM_SPANS)

    # Embedding lookup + mask (gather glue; stays outside the kernel).
    x_masked = embedding_matrix[token_ids] * token_mask[:, :, None]

    y_pred, r = imdb_forward(x_masked, token_mask, *params)
    jax.block_until_ready((y_pred, r))

    y_ref, r_ref_out = ref_forward(x_masked, token_mask, *params)
    np.testing.assert_allclose(np.asarray(y_pred), np.asarray(y_ref),
                               rtol=1e-4, atol=1e-5)
    np.testing.assert_allclose(np.asarray(r), np.asarray(r_ref_out),
                               rtol=1e-4, atol=1e-5)
    print("KERNEL_OK")
</pallas_src>

<mosaic_0001>
module attributes {stable_mosaic.version = 11 : i64} {
  func.func @imdb_kernel(%arg0: i32, %arg1: memref<2x20x32xf32, #tpu.memory_space<vmem>>, %arg2: memref<2x16x1xf32, #tpu.memory_space<vmem>>, %arg3: memref<2x1x16xf32, #tpu.memory_space<vmem>>, %arg4: memref<16x16xf32, #tpu.memory_space<vmem>>, %arg5: memref<16x16xf32, #tpu.memory_space<vmem>>, %arg6: memref<160x256xf32, #tpu.memory_space<vmem>>, %arg7: memref<1x256xf32, #tpu.memory_space<vmem>>, %arg8: memref<256x8xf32, #tpu.memory_space<vmem>>, %arg9: memref<1x8xf32, #tpu.memory_space<vmem>>, %arg10: memref<256x1xf32, #tpu.memory_space<vmem>>, %arg11: memref<1x1xf32, #tpu.memory_space<vmem>>, %arg12: memref<2x1xf32, #tpu.memory_space<vmem>>, %arg13: memref<2x3x16xf32, #tpu.memory_space<vmem>>) attributes {dimension_semantics = [#tpu.dimension_semantics<parallel>], iteration_bounds = array<i64: 1>, scalar_prefetch = 0 : i64, scratch_operands = 0 : i64, tpu.core_type = #tpu.core_type<tc>, window_params = [{transform_indices = @transform_0, window_bounds = array<i64: 2, 20, 32>}, {transform_indices = @transform_1, window_bounds = array<i64: 2, 16, 1>}, {transform_indices = @transform_2, window_bounds = array<i64: 2, 1, 16>}, {pipeline_mode = #tpu.pipeline_mode<synchronous>, transform_indices = @transform_3, window_bounds = array<i64: 16, 16>}, {pipeline_mode = #tpu.pipeline_mode<synchronous>, transform_indices = @transform_4, window_bounds = array<i64: 16, 16>}, {pipeline_mode = #tpu.pipeline_mode<synchronous>, transform_indices = @transform_5, window_bounds = array<i64: 160, 256>}, {pipeline_mode = #tpu.pipeline_mode<synchronous>, transform_indices = @transform_6, window_bounds = array<i64: 1, 256>}, {pipeline_mode = #tpu.pipeline_mode<synchronous>, transform_indices = @transform_7, window_bounds = array<i64: 256, 8>}, {pipeline_mode = #tpu.pipeline_mode<synchronous>, transform_indices = @transform_8, window_bounds = array<i64: 1, 8>}, {pipeline_mode = #tpu.pipeline_mode<synchronous>, transform_indices = @transform_9, window_bounds = array<i64: 256, 1>}, {pipeline_mode = #tpu.pipeline_mode<synchronous>, transform_indices = @transform_10, window_bounds = array<i64: 1, 1>}, {transform_indices = @transform_11, window_bounds = array<i64: 2, 1>}, {transform_indices = @transform_12, window_bounds = array<i64: 2, 3, 16>}]} {
    %c0 = arith.constant 0 : index
    %c0_0 = arith.constant 0 : index
    %c0_1 = arith.constant 0 : index
    %0 = vector.load %arg2[%c0, %c0_0, %c0_1] : memref<2x16x1xf32, #tpu.memory_space<vmem>>, vector<2x16x1xf32>
    %1 = vector.shape_cast %0 : vector<2x16x1xf32> to vector<32x1xf32>
    %c0_2 = arith.constant 0 : index
    %c0_3 = arith.constant 0 : index
    %c0_4 = arith.constant 0 : index
    %2 = vector.load %arg3[%c0_2, %c0_3, %c0_4] : memref<2x1x16xf32, #tpu.memory_space<vmem>>, vector<2x1x16xf32>
    %c0_5 = arith.constant 0 : index
    %c0_6 = arith.constant 0 : index
    %c0_7 = arith.constant 0 : index
    %3 = vector.load %arg1[%c0_5, %c0_6, %c0_7] : memref<2x20x32xf32, #tpu.memory_space<vmem>>, vector<2x20x32xf32>
    %4 = vector.extract_strided_slice %3 {offsets = [0, 0, 0], sizes = [2, 16, 32], strides = [1, 1, 1]} : vector<2x20x32xf32> to vector<2x16x32xf32>
    %5 = vector.shape_cast %4 : vector<2x16x32xf32> to vector<32x32xf32>
    %c0_8 = arith.constant 0 : index
    %c0_9 = arith.constant 0 : index
    %6 = vector.load %arg6[%c0_8, %c0_9] : memref<160x256xf32, #tpu.memory_space<vmem>>, vector<32x256xf32>
    %cst = arith.constant dense<0.000000e+00> : vector<32x256xf32>
    %7 = tpu.matmul %5, %6, %cst {dimension_numbers = #tpu.dot_dimension_numbers<[1], [0], [0], [1], [0, 0, 1, 1], [], []>} : vector<32x32xf32>, vector<32x256xf32>, vector<32x256xf32> -> vector<32x256xf32>
    %8 = vector.extract_strided_slice %3 {offsets = [0, 1, 0], sizes = [2, 16, 32], strides = [1, 1, 1]} : vector<2x20x32xf32> to vector<2x16x32xf32>
    %9 = vector.shape_cast %8 : vector<2x16x32xf32> to vector<32x32xf32>
    %c32 = arith.constant 32 : index
    %c0_10 = arith.constant 0 : index
    %10 = vector.load %arg6[%c32, %c0_10] : memref<160x256xf32, #tpu.memory_space<vmem>>, vector<32x256xf32>
    %cst_11 = arith.constant dense<0.000000e+00> : vector<32x256xf32>
    %11 = tpu.matmul %9, %10, %cst_11 {dimension_numbers = #tpu.dot_dimension_numbers<[1], [0], [0], [1], [0, 0, 1, 1], [], []>} : vector<32x32xf32>, vector<32x256xf32>, vector<32x256xf32> -> vector<32x256xf32>
    %12 = arith.addf %7, %11 : vector<32x256xf32>
    %13 = vector.extract_strided_slice %3 {offsets = [0, 2, 0], sizes = [2, 16, 32], strides = [1, 1, 1]} : vector<2x20x32xf32> to vector<2x16x32xf32>
    %14 = vector.shape_cast %13 : vector<2x16x32xf32> to vector<32x32xf32>
    %c64 = arith.constant 64 : index
    %c0_12 = arith.constant 0 : index
    %15 = vector.load %arg6[%c64, %c0_12] : memref<160x256xf32, #tpu.memory_space<vmem>>, vector<32x256xf32>
    %cst_13 = arith.constant dense<0.000000e+00> : vector<32x256xf32>
    %16 = tpu.matmul %14, %15, %cst_13 {dimension_numbers = #tpu.dot_dimension_numbers<[1], [0], [0], [1], [0, 0, 1, 1], [], []>} : vector<32x32xf32>, vector<32x256xf32>, vector<32x256xf32> -> vector<32x256xf32>
    %17 = arith.addf %12, %16 : vector<32x256xf32>
    %18 = vector.extract_strided_slice %3 {offsets = [0, 3, 0], sizes = [2, 16, 32], strides = [1, 1, 1]} : vector<2x20x32xf32> to vector<2x16x32xf32>
    %19 = vector.shape_cast %18 : vector<2x16x32xf32> to vector<32x32xf32>
    %c96 = arith.constant 96 : index
    %c0_14 = arith.constant 0 : index
    %20 = vector.load %arg6[%c96, %c0_14] : memref<160x256xf32, #tpu.memory_space<vmem>>, vector<32x256xf32>
    %cst_15 = arith.constant dense<0.000000e+00> : vector<32x256xf32>
    %21 = tpu.matmul %19, %20, %cst_15 {dimension_numbers = #tpu.dot_dimension_numbers<[1], [0], [0], [1], [0, 0, 1, 1], [], []>} : vector<32x32xf32>, vector<32x256xf32>, vector<32x256xf32> -> vector<32x256xf32>
    %22 = arith.addf %17, %21 : vector<32x256xf32>
    %23 = vector.extract_strided_slice %3 {offsets = [0, 4, 0], sizes = [2, 16, 32], strides = [1, 1, 1]} : vector<2x20x32xf32> to vector<2x16x32xf32>
    %24 = vector.shape_cast %23 : vector<2x16x32xf32> to vector<32x32xf32>
    %c128 = arith.constant 128 : index
    %c0_16 = arith.constant 0 : index
    %25 = vector.load %arg6[%c128, %c0_16] : memref<160x256xf32, #tpu.memory_space<vmem>>, vector<32x256xf32>
    %cst_17 = arith.constant dense<0.000000e+00> : vector<32x256xf32>
    %26 = tpu.matmul %24, %25, %cst_17 {dimension_numbers = #tpu.dot_dimension_numbers<[1], [0], [0], [1], [0, 0, 1, 1], [], []>} : vector<32x32xf32>, vector<32x256xf32>, vector<32x256xf32> -> vector<32x256xf32>
    %27 = arith.addf %22, %26 : vector<32x256xf32>
    %c0_18 = arith.constant 0 : index
    %c0_19 = arith.constant 0 : index
    %28 = vector.load %arg7[%c0_18, %c0_19] : memref<1x256xf32, #tpu.memory_space<vmem>>, vector<1x256xf32>
    %29 = vector.broadcast %28 : vector<1x256xf32> to vector<32x256xf32>
    %30 = arith.addf %27, %29 : vector<32x256xf32>
    %cst_20 = arith.constant 0.000000e+00 : f32
    %31 = vector.broadcast %cst_20 : f32 to vector<32x256xf32>
    %32 = arith.maximumf %30, %31 : vector<32x256xf32>
    %33 = vector.broadcast %1 : vector<32x1xf32> to vector<32x256xf32>
    %34 = arith.mulf %32, %33 : vector<32x256xf32>
    %c0_21 = arith.constant 0 : index
    %c0_22 = arith.constant 0 : index
    %35 = vector.load %arg8[%c0_21, %c0_22] : memref<256x8xf32, #tpu.memory_space<vmem>>, vector<256x8xf32>
    %cst_23 = arith.constant dense<0.000000e+00> : vector<32x8xf32>
    %36 = tpu.matmul %34, %35, %cst_23 {dimension_numbers = #tpu.dot_dimension_numbers<[1], [0], [0], [1], [0, 0, 1, 1], [], []>} : vector<32x256xf32>, vector<256x8xf32>, vector<32x8xf32> -> vector<32x8xf32>
    %c0_24 = arith.constant 0 : index
    %c0_25 = arith.constant 0 : index
    %37 = vector.load %arg9[%c0_24, %c0_25] : memref<1x8xf32, #tpu.memory_space<vmem>>, vector<1x8xf32>
    %38 = vector.broadcast %37 : vector<1x8xf32> to vector<32x8xf32>
    %39 = arith.addf %36, %38 : vector<32x8xf32>
    %40 = vector.shape_cast %39 : vector<32x8xf32> to vector<2x16x8xf32>
    %41 = tpu.transpose %40, [0, 2, 1] : vector<2x16x8xf32> -> vector<2x8x16xf32>
    %cst_26 = arith.constant 0.000000e+00 : f32
    %42 = vector.broadcast %cst_26 : f32 to vector<2x1x16xf32>
    %43 = arith.cmpf ogt, %2, %42 : vector<2x1x16xf32>
    %cst_27 = arith.constant -1.000000e+30 : f32
    %44 = vector.shape_cast %43 : vector<2x1x16xi1> to vector<2x1x16xi1>
    %45 = vector.broadcast %44 : vector<2x1x16xi1> to vector<2x8x16xi1>
    %46 = vector.broadcast %cst_27 : f32 to vector<2x8x16xf32>
    %47 = arith.select %45, %41, %46 : vector<2x8x16xi1>, vector<2x8x16xf32>
    %cst_28 = arith.constant dense<0xFF800000> : vector<2x8xf32>
    %48 = vector.multi_reduction <maximumf>, %47, %cst_28 [2] : vector<2x8x16xf32> to vector<2x8xf32>
    %49 = vector.shape_cast %48 : vector<2x8xf32> to vector<2x8x1xf32>
    %50 = vector.broadcast %49 : vector<2x8x1xf32> to vector<2x8x16xf32>
    %51 = arith.subf %47, %50 : vector<2x8x16xf32>
    %52 = math.exp %51 : vector<2x8x16xf32>
    %53 = vector.broadcast %2 : vector<2x1x16xf32> to vector<2x8x16xf32>
    %54 = arith.mulf %52, %53 : vector<2x8x16xf32>
    %cst_29 = arith.constant dense<0.000000e+00> : vector<2x8xf32>
    %55 = vector.multi_reduction <add>, %54, %cst_29 [2] : vector<2x8x16xf32> to vector<2x8xf32>
    %56 = vector.shape_cast %55 : vector<2x8xf32> to vector<2x8x1xf32>
    %cst_30 = arith.constant 9.99999993E-9 : f32
    %57 = vector.broadcast %cst_30 : f32 to vector<2x8x1xf32>
    %58 = arith.addf %56, %57 : vector<2x8x1xf32>
    %59 = tpu.reciprocal %58 : vector<2x8x1xf32> -> vector<2x8x1xf32>
    %60 = vector.broadcast %59 : vector<2x8x1xf32> to vector<2x8x16xf32>
    %61 = arith.mulf %54, %60 : vector<2x8x16xf32>
    %62 = vector.shape_cast %61 : vector<2x8x16xf32> to vector<16x16xf32>
    %c0_31 = arith.constant 0 : index
    %c0_32 = arith.constant 0 : index
    %63 = vector.load %arg4[%c0_31, %c0_32] : memref<16x16xf32, #tpu.memory_space<vmem>>, vector<16x16xf32>
    %cst_33 = arith.constant dense<0.000000e+00> : vector<16x16xf32>
    %64 = tpu.matmul %62, %63, %cst_33 {dimension_numbers = #tpu.dot_dimension_numbers<[1], [0], [0], [1], [0, 0, 1, 1], [], []>} : vector<16x16xf32>, vector<16x16xf32>, vector<16x16xf32> -> vector<16x16xf32>
    %c0_34 = arith.constant 0 : index
    %c0_35 = arith.constant 0 : index
    %65 = vector.load %arg5[%c0_34, %c0_35] : memref<16x16xf32, #tpu.memory_space<vmem>>, vector<16x16xf32>
    %cst_36 = arith.constant dense<0.000000e+00> : vector<16x16xf32>
    %66 = tpu.matmul %62, %65, %cst_36 {dimension_numbers = #tpu.dot_dimension_numbers<[1], [0], [0], [1], [0, 0, 1, 1], [], []>} : vector<16x16xf32>, vector<16x16xf32>, vector<16x16xf32> -> vector<16x16xf32>
    %67 = vector.shape_cast %64 : vector<16x16xf32> to vector<2x8x16xf32>
    %68 = vector.shape_cast %66 : vector<16x16xf32> to vector<2x8x16xf32>
    %69 = vector.extract_strided_slice %67 {offsets = [0, 0, 0], sizes = [2, 3, 16], strides = [1, 1, 1]} : vector<2x8x16xf32> to vector<2x3x16xf32>
    %70 = vector.extract_strided_slice %68 {offsets = [0, 3, 0], sizes = [2, 3, 16], strides = [1, 1, 1]} : vector<2x8x16xf32> to vector<2x3x16xf32>
    %71 = arith.mulf %69, %70 : vector<2x3x16xf32>
    %cst_37 = arith.constant dense<0.000000e+00> : vector<2x3xf32>
    %72 = vector.multi_reduction <add>, %71, %cst_37 [2] : vector<2x3x16xf32> to vector<2x3xf32>
    %73 = vector.shape_cast %72 : vector<2x3xf32> to vector<2x3x1xf32>
    %cst_38 = arith.constant 9.99999993E-9 : f32
    %74 = vector.broadcast %cst_38 : f32 to vector<2x3x1xf32>
    %75 = arith.addf %73, %74 : vector<2x3x1xf32>
    %76 = tpu.reciprocal %75 : vector<2x3x1xf32> -> vector<2x3x1xf32>
    %77 = vector.broadcast %76 : vector<2x3x1xf32> to vector<2x3x16xf32>
    %78 = arith.mulf %71, %77 : vector<2x3x16xf32>
    %c0_39 = arith.constant 0 : index
    %c0_40 = arith.constant 0 : index
    %c0_41 = arith.constant 0 : index
    %79 = vector.load %arg13[%c0_39, %c0_40, %c0_41] : memref<2x3x16xf32, #tpu.memory_space<vmem>>, vector<2x3x16xf32>
    tpu.vector_store %arg13[%c0_39, %c0_40, %c0_41], %78 {strides = array<i32>} : memref<2x3x16xf32, #tpu.memory_space<vmem>>, vector<2x3x16xf32>,
    %80 = vector.shape_cast %34 : vector<32x256xf32> to vector<2x16x256xf32>
    %81 = tpu.transpose %78, [0, 2, 1] : vector<2x3x16xf32> -> vector<2x16x3xf32>
    %82 = vector.extract_strided_slice %81 {offsets = [0, 0, 0], sizes = [2, 16, 1], strides = [1, 1, 1]} : vector<2x16x3xf32> to vector<2x16x1xf32>
    %83 = vector.broadcast %82 : vector<2x16x1xf32> to vector<2x16x256xf32>
    %84 = arith.mulf %80, %83 : vector<2x16x256xf32>
    %cst_42 = arith.constant dense<0xFF800000> : vector<2x256xf32>
    %85 = vector.multi_reduction <maximumf>, %84, %cst_42 [1] : vector<2x16x256xf32> to vector<2x256xf32>
    %86 = vector.extract_strided_slice %81 {offsets = [0, 0, 1], sizes = [2, 16, 1], strides = [1, 1, 1]} : vector<2x16x3xf32> to vector<2x16x1xf32>
    %87 = vector.broadcast %86 : vector<2x16x1xf32> to vector<2x16x256xf32>
    %88 = arith.mulf %80, %87 : vector<2x16x256xf32>
    %cst_43 = arith.constant dense<0xFF800000> : vector<2x256xf32>
    %89 = vector.multi_reduction <maximumf>, %88, %cst_43 [1] : vector<2x16x256xf32> to vector<2x256xf32>
    %90 = vector.extract_strided_slice %81 {offsets = [0, 0, 2], sizes = [2, 16, 1], strides = [1, 1, 1]} : vector<2x16x3xf32> to vector<2x16x1xf32>
    %91 = vector.broadcast %90 : vector<2x16x1xf32> to vector<2x16x256xf32>
    %92 = arith.mulf %80, %91 : vector<2x16x256xf32>
    %cst_44 = arith.constant dense<0xFF800000> : vector<2x256xf32>
    %93 = vector.multi_reduction <maximumf>, %92, %cst_44 [1] : vector<2x16x256xf32> to vector<2x256xf32>
    %94 = tpu.concatenate %85, %89, %93 in 0 : vector<2x256xf32>, vector<2x256xf32>, vector<2x256xf32> -> vector<6x256xf32>
    %c0_45 = arith.constant 0 : index
    %c0_46 = arith.constant 0 : index
    %95 = vector.load %arg10[%c0_45, %c0_46] : memref<256x1xf32, #tpu.memory_space<vmem>>, vector<256x1xf32>
    %cst_47 = arith.constant dense<0.000000e+00> : vector<6x1xf32>
    %96 = tpu.matmul %94, %95, %cst_47 {dimension_numbers = #tpu.dot_dimension_numbers<[1], [0], [0], [1], [0, 0, 1, 1], [], []>} : vector<6x256xf32>, vector<256x1xf32>, vector<6x1xf32> -> vector<6x1xf32>
    %c0_48 = arith.constant 0 : index
    %c0_49 = arith.constant 0 : index
    %97 = vector.load %arg11[%c0_48, %c0_49] : memref<1x1xf32, #tpu.memory_space<vmem>>, vector<1x1xf32>
    %98 = vector.broadcast %97 : vector<1x1xf32> to vector<6x1xf32>
    %99 = arith.addf %96, %98 : vector<6x1xf32>
    %100 = math.tanh %99 : vector<6x1xf32>
    %101 = vector.extract_strided_slice %100 {offsets = [0, 0], sizes = [2, 1], strides = [1, 1]} : vector<6x1xf32> to vector<2x1xf32>
    %102 = vector.extract_strided_slice %100 {offsets = [2, 0], sizes = [2, 1], strides = [1, 1]} : vector<6x1xf32> to vector<2x1xf32>
    %103 = arith.addf %101, %102 : vector<2x1xf32>
    %104 = vector.extract_strided_slice %100 {offsets = [4, 0], sizes = [2, 1], strides = [1, 1]} : vector<6x1xf32> to vector<2x1xf32>
    %105 = arith.addf %103, %104 : vector<2x1xf32>
    %c0_50 = arith.constant 0 : index
    %c0_51 = arith.constant 0 : index
    %106 = vector.load %arg12[%c0_50, %c0_51] : memref<2x1xf32, #tpu.memory_space<vmem>>, vector<2x1xf32>
    tpu.vector_store %arg12[%c0_50, %c0_51], %105 {strides = array<i32>} : memref<2x1xf32, #tpu.memory_space<vmem>>, vector<2x1xf32>,
    return
  }
  func.func @transform_0(%arg0: i32) -> (i32, i32, i32) {
    %c0_i32 = arith.constant 0 : i32
    %c0_i32_0 = arith.constant 0 : i32
    %c0_i32_1 = arith.constant 0 : i32
    return %arg0, %c0_i32, %c0_i32_0 : i32, i32, i32
  }
  func.func @transform_1(%arg0: i32) -> (i32, i32, i32) {
    %c0_i32 = arith.constant 0 : i32
    %c0_i32_0 = arith.constant 0 : i32
    %c0_i32_1 = arith.constant 0 : i32
    return %arg0, %c0_i32, %c0_i32_0 : i32, i32, i32
  }
  func.func @transform_2(%arg0: i32) -> (i32, i32, i32) {
    %c0_i32 = arith.constant 0 : i32
    %c0_i32_0 = arith.constant 0 : i32
    %c0_i32_1 = arith.constant 0 : i32
    return %arg0, %c0_i32, %c0_i32_0 : i32, i32, i32
  }
  func.func @transform_3(%arg0: i32) -> (i32, i32) {
    %c0_i32 = arith.constant 0 : i32
    %c0_i32_0 = arith.constant 0 : i32
    %c0_i32_1 = arith.constant 0 : i32
    return %c0_i32, %c0_i32_0 : i32, i32
  }
  func.func @transform_4(%arg0: i32) -> (i32, i32) {
    %c0_i32 = arith.constant 0 : i32
    %c0_i32_0 = arith.constant 0 : i32
    %c0_i32_1 = arith.constant 0 : i32
    return %c0_i32, %c0_i32_0 : i32, i32
  }
  func.func @transform_5(%arg0: i32) -> (i32, i32) {
    %c0_i32 = arith.constant 0 : i32
    %c0_i32_0 = arith.constant 0 : i32
    %c0_i32_1 = arith.constant 0 : i32
    return %c0_i32, %c0_i32_0 : i32, i32
  }
  func.func @transform_6(%arg0: i32) -> (i32, i32) {
    %c0_i32 = arith.constant 0 : i32
    %c0_i32_0 = arith.constant 0 : i32
    %c0_i32_1 = arith.constant 0 : i32
    return %c0_i32, %c0_i32_0 : i32, i32
  }
  func.func @transform_7(%arg0: i32) -> (i32, i32) {
    %c0_i32 = arith.constant 0 : i32
    %c0_i32_0 = arith.constant 0 : i32
    %c0_i32_1 = arith.constant 0 : i32
    return %c0_i32, %c0_i32_0 : i32, i32
  }
  func.func @transform_8(%arg0: i32) -> (i32, i32) {
    %c0_i32 = arith.constant 0 : i32
    %c0_i32_0 = arith.constant 0 : i32
    %c0_i32_1 = arith.constant 0 : i32
    return %c0_i32, %c0_i32_0 : i32, i32
  }
  func.func @transform_9(%arg0: i32) -> (i32, i32) {
    %c0_i32 = arith.constant 0 : i32
    %c0_i32_0 = arith.constant 0 : i32
    %c0_i32_1 = arith.constant 0 : i32
    return %c0_i32, %c0_i32_0 : i32, i32
  }
  func.func @transform_10(%arg0: i32) -> (i32, i32) {
    %c0_i32 = arith.constant 0 : i32
    %c0_i32_0 = arith.constant 0 : i32
    %c0_i32_1 = arith.constant 0 : i32
    return %c0_i32, %c0_i32_0 : i32, i32
  }
  func.func @transform_11(%arg0: i32) -> (i32, i32) {
    %c0_i32 = arith.constant 0 : i32
    %c0_i32_0 = arith.constant 0 : i32
    return %arg0, %c0_i32 : i32, i32
  }
  func.func @transform_12(%arg0: i32) -> (i32, i32, i32) {
    %c0_i32 = arith.constant 0 : i32
    %c0_i32_0 = arith.constant 0 : i32
    %c0_i32_1 = arith.constant 0 : i32
    return %arg0, %c0_i32, %c0_i32_0 : i32, i32, i32
  }
}

</mosaic_0001>

<llo_original>
// kernel: imdb_forward.1
$region0: #{imdb_forward.1}
  #allocation0 [shape = 'u32[]', space=smem, size = 0x4, offset = 0x4, fixed_abs, tag = 'smem constant byte address 0x4 - core index']
  #allocation1 [shape = 'u32[72,128]{1,0:T(1,128)}', space=vmem, size = 0x9000, scoped, tag = 'internal scratch']
  #allocation2 [shape = 'f32[1,1]{1,0:T(1,128)S(1)}', space=vmem, size = 0x200, scoped, tag = 'scoped memory for imdb_forward.1']
  %s0 = inlined_call_operand.vmem [shape: f32[2,20,32], index: 0, kind: input, shape index: {}]
  %s1 = inlined_call_operand.vmem [shape: f32[2,16,1], index: 1, kind: input, shape index: {}]
  %s2 = inlined_call_operand.vmem [shape: f32[2,1,16], index: 2, kind: input, shape index: {}]
  %s3 = inlined_call_operand.vmem [shape: f32[16,16], index: 3, kind: input, shape index: {}]
  %s4 = inlined_call_operand.vmem [shape: f32[16,16], index: 4, kind: input, shape index: {}]
  %s5 = inlined_call_operand.vmem [shape: f32[160,256], index: 5, kind: input, shape index: {}]
  %s6 = inlined_call_operand.vmem [shape: f32[1,256], index: 6, kind: input, shape index: {}]
  %s7 = inlined_call_operand.vmem [shape: f32[256,8], index: 7, kind: input, shape index: {}]
  %s8 = inlined_call_operand.vmem [shape: f32[1,8], index: 8, kind: input, shape index: {}]
  %s9 = inlined_call_operand.vmem [shape: f32[256,1], index: 9, kind: input, shape index: {}]
  %s10 = inlined_call_operand.<no memory space> [shape: f32[1,1], index: 10, kind: input, shape index: {}]
  %s11 = inlined_call_operand.vmem [shape: f32[2,1], index: 11, kind: output, shape index: {0}]
  %s12 = inlined_call_operand.vmem [shape: f32[2,3,16], index: 12, kind: output, shape index: {1}]
  %13 = xla_tuple %s11, %s12
  %s14 = sld [smem:[#allocation0]]
  $region62: #{imdb_forward.1} parent=0
    _
  %s16 = ssub.s32 1, %s14
  %s17 = scalar_select 0, %s16, %s14
  %v18 = vstv %s10
  %19 = vst [vmem:[#allocation2] sm:$0x1] %v18
  // Predicated region
  $region2: #{imdb_forward.1} parent=0 // pred_check
    _
  $region3: #{imdb_forward.1} parent=0 // pred_check_branch
    %21 = sbr.rel (0) target = $region5
  $region4: #{imdb_forward.1} parent=0 // pred_region
    _
  $region5: #{imdb_forward.1} parent=0 // pred_fallthru
    _
  // Predicated region
  $region6: #{imdb_forward.1} parent=0 // pred_check
    _
  $region7: #{imdb_forward.1} parent=0 // pred_check_branch
    %23 = sbr.rel (0) target = $region9
  $region8: #{imdb_forward.1} parent=0 // pred_region
    _
  $region9: #{imdb_forward.1} parent=0 // pred_fallthru
    _
  // Predicated region
  $region10: #{imdb_forward.1} parent=0 // pred_check
    _
  $region11: #{imdb_forward.1} parent=0 // pred_check_branch
    %25 = sbr.rel (0) target = $region13
  $region12: #{imdb_forward.1} parent=0 // pred_region
    _
  $region13: #{imdb_forward.1} parent=0 // pred_fallthru
    _
  // Predicated region
  $region14: #{imdb_forward.1} parent=0 // pred_check
    _
  $region15: #{imdb_forward.1} parent=0 // pred_check_branch
    %27 = sbr.rel (0) target = $region17
  $region16: #{imdb_forward.1} parent=0 // pred_region
    _
  $region17: #{imdb_forward.1} parent=0 // pred_fallthru
    _
  // Predicated region
  $region18: #{imdb_forward.1} parent=0 // pred_check
    _
  $region19: #{imdb_forward.1} parent=0 // pred_check_branch
    %29 = sbr.rel (0) target = $region21
  $region20: #{imdb_forward.1} parent=0 // pred_region
    _
  $region21: #{imdb_forward.1} parent=0 // pred_fallthru
    _
  // Predicated region
  $region22: #{imdb_forward.1} parent=0 // pred_check
    _
  $region23: #{imdb_forward.1} parent=0 // pred_check_branch
    %31 = sbr.rel (0) target = $region25
  $region24: #{imdb_forward.1} parent=0 // pred_region
    _
  $region25: #{imdb_forward.1} parent=0 // pred_fallthru
    _
  // Predicated region
  $region26: #{imdb_forward.1} parent=0 // pred_check
    _
  $region27: #{imdb_forward.1} parent=0 // pred_check_branch
    %33 = sbr.rel (0) target = $region29
  $region28: #{imdb_forward.1} parent=0 // pred_region
    _
  $region29: #{imdb_forward.1} parent=0 // pred_fallthru
    _
  // Predicated region
  $region30: #{imdb_forward.1} parent=0 // pred_check
    _
  $region31: #{imdb_forward.1} parent=0 // pred_check_branch
    %35 = sbr.rel (0) target = $region33
  $region32: #{imdb_forward.1} parent=0 // pred_region
    _
  $region33: #{imdb_forward.1} parent=0 // pred_fallthru
    _
  // Predicated region
  $region34: #{imdb_forward.1} parent=0 // pred_check
    _
  $region35: #{imdb_forward.1} parent=0 // pred_check_branch
    %37 = sbr.rel (0) target = $region37
  $region36: #{imdb_forward.1} parent=0 // pred_region
    _
  $region37: #{imdb_forward.1} parent=0 // pred_fallthru
    _
  // Predicated region
  $region38: #{imdb_forward.1} parent=0 // pred_check
    _
  $region39: #{imdb_forward.1} parent=0 // pred_check_branch
    %39 = sbr.rel (0) target = $region41
  $region40: #{imdb_forward.1} parent=0 // pred_region
    _
  $region41: #{imdb_forward.1} parent=0 // pred_fallthru
    _
  // Predicated region
  $region42: #{imdb_forward.1} parent=0 // pred_check
    _
  $region43: #{imdb_forward.1} parent=0 // pred_check_branch
    %41 = sbr.rel (0) target = $region45
  $region44: #{imdb_forward.1} parent=0 // pred_region
    _
  $region45: #{imdb_forward.1} parent=0 // pred_fallthru
    _
  %v42 = vld [vmem:[%s1] sm:$0xff]
  %v43 = vld [vmem:[%s1 + $0x8] sm:$0xff]
  %v44 = vld [vmem:[%s1 + $0x10] sm:$0xff]
  %v45 = vld [vmem:[%s1 + $0x18] sm:$0xff]
  %v46 = vld [vmem:[%s2] sm:$0x1]
  %v47 = vld [vmem:[%s2 + $0x1] sm:$0x1]
  %v48 = vld [vmem:[%s0] sm:$0xff]
  %v49 = vld [vmem:[%s0 + $0x8] sm:$0xff]
  %v50 = vld [vmem:[%s0 + $0x10] sm:$0xf]
  %v51 = vld [vmem:[%s0 + $0x18] sm:$0xff]
  %v52 = vld [vmem:[%s0 + $0x20] sm:$0xff]
  %v53 = vld [vmem:[%s0 + $0x28] sm:$0xf]
  %v54 = vld [vmem:[%s5] sm:$0xff]
  %v55 = vld [vmem:[%s5 + $0x8] sm:$0xff]
  %v56 = vld [vmem:[%s5 + $0x10] sm:$0xff]
  %v57 = vld [vmem:[%s5 + $0x18] sm:$0xff]
  %v58 = vld [vmem:[%s5 + $0x20] sm:$0xff]
  %v59 = vld [vmem:[%s5 + $0x28] sm:$0xff]
  %v60 = vld [vmem:[%s5 + $0x30] sm:$0xff]
  %v61 = vld [vmem:[%s5 + $0x38] sm:$0xff]
  %vm68 = vcmask 1046528
  %v69 = vrot.slane %v48, 1
  %v70 = vrot.slane %v49, 1
  %v71 = vsel %vm68, %v69, %v70
  %v72 = vrot.slane %v50, 1
  %v73 = vsel %vm68, %v70, %v72
  %v74 = vrot.slane %v51, 1
  %v75 = vrot.slane %v52, 1
  %v76 = vsel %vm68, %v74, %v75
  %v77 = vrot.slane %v53, 1
  %v78 = vsel %vm68, %v75, %v77
  %v79 = vld [vmem:[%s5 + $0x40] sm:$0xff]
  %v80 = vld [vmem:[%s5 + $0x48] sm:$0xff]
  %v81 = vld [vmem:[%s5 + $0x50] sm:$0xff]
  %v82 = vld [vmem:[%s5 + $0x58] sm:$0xff]
  %v83 = vld [vmem:[%s5 + $0x60] sm:$0xff]
  %v84 = vld [vmem:[%s5 + $0x68] sm:$0xff]
  %v85 = vld [vmem:[%s5 + $0x70] sm:$0xff]
  %v86 = vld [vmem:[%s5 + $0x78] sm:$0xff]
  %vm87 = vcmask 261120
  %v88 = vsel %vm87, %v71, 0
  %v90 = vsel %vm87, %v73, 0
  %v92 = vsel %vm87, %v76, 0
  %v94 = vsel %vm87, %v78, 0
  %96 = vmatpush.msra.mxu0 0.0
  %97 = vmatpush.msra.mxu0 0.0
  %98 = vmatpush.msra.mxu0 0.0
  %99 = vmatpush.msra.mxu0 0.0
  %100 = vmatpush.msra.mxu0 0.0
  %101 = vmatpush.msra.mxu0 0.0
  %102 = vmatpush.msra.mxu0 0.0
  %103 = vmatpush.msra.mxu0 0.0
  %104 = vmatpush.msra.mxu0 0.0
  %105 = vmatpush.msra.mxu0 0.0
  %106 = vmatpush.msra.mxu0 0.0
  %107 = vmatpush.msra.mxu0 0.0
  %108 = vmatpush.msra.mxu0 %v85
  %109 = vmatpush.msra.mxu0 %v83
  %110 = vmatpush.msra.mxu0 %v81
  %111 = vmatpush.msra.mxu0 %v79
  %112 = vmatmul.f32.gmra.mxu0 %v88
  %v113 = vpop.f32.mrf.mxu0
  %v114 = vadd.f32 0.0, %v113
  %115 = vmatmul.f32.gmra.mxu0 %v90
  %v116 = vpop.f32.mrf.mxu0
  %v117 = vadd.f32 0.0, %v116
  %118 = vmatmul.f32.gmra.mxu0 %v92
  %v119 = vpop.f32.mrf.mxu0
  %v120 = vadd.f32 0.0, %v119
  %121 = vmatmul.f32.gmra.mxu0 %v94
  %v122 = vpop.f32.mrf.mxu0
  %v123 = vadd.f32 0.0, %v122
  %124 = vdwg.mxu0
  %125 = vmatpush.msra.mxu0 0.0
  %126 = vmatpush.msra.mxu0 0.0
  %127 = vmatpush.msra.mxu0 0.0
  %128 = vmatpush.msra.mxu0 0.0
  %129 = vmatpush.msra.mxu0 0.0
  %130 = vmatpush.msra.mxu0 0.0
  %131 = vmatpush.msra.mxu0 0.0
  %132 = vmatpush.msra.mxu0 0.0
  %133 = vmatpush.msra.mxu0 0.0
  %134 = vmatpush.msra.mxu0 0.0
  %135 = vmatpush.msra.mxu0 0.0
  %136 = vmatpush.msra.mxu0 0.0
  %137 = vmatpush.msra.mxu0 %v86
  %138 = vmatpush.msra.mxu0 %v84
  %139 = vmatpush.msra.mxu0 %v82
  %140 = vmatpush.msra.mxu0 %v80
  %141 = vmatmul.f32.gmra.mxu0 %v88
  %v142 = vpop.f32.mrf.mxu0
  %v143 = vadd.f32 0.0, %v142
  %144 = vmatmul.f32.gmra.mxu0 %v90
  %v145 = vpop.f32.mrf.mxu0
  %v146 = vadd.f32 0.0, %v145
  %147 = vmatmul.f32.gmra.mxu0 %v92
  %v148 = vpop.f32.mrf.mxu0
  %v149 = vadd.f32 0.0, %v148
  %150 = vmatmul.f32.gmra.mxu0 %v94
  %v151 = vpop.f32.mrf.mxu0
  %v152 = vadd.f32 0.0, %v151
  %153 = vdwg.mxu0
  %v154 = vsel %vm87, %v48, 0
  %v156 = vsel %vm87, %v49, 0
  %v158 = vsel %vm87, %v51, 0
  %v160 = vsel %vm87, %v52, 0
  %162 = vmatpush.msra.mxu0 0.0
  %163 = vmatpush.msra.mxu0 0.0
  %164 = vmatpush.msra.mxu0 0.0
  %165 = vmatpush.msra.mxu0 0.0
  %166 = vmatpush.msra.mxu0 0.0
  %167 = vmatpush.msra.mxu0 0.0
  %168 = vmatpush.msra.mxu0 0.0
  %169 = vmatpush.msra.mxu0 0.0
  %170 = vmatpush.msra.mxu0 0.0
  %171 = vmatpush.msra.mxu0 0.0
  %172 = vmatpush.msra.mxu0 0.0
  %173 = vmatpush.msra.mxu0 0.0
  %174 = vmatpush.msra.mxu0 %v60
  %175 = vmatpush.msra.mxu0 %v58
  %176 = vmatpush.msra.mxu0 %v56
  %177 = vmatpush.msra.mxu0 %v54
  %178 = vmatmul.f32.gmra.mxu0 %v154
  %v179 = vpop.f32.mrf.mxu0
  %v180 = vadd.f32 %v114, %v179
  %181 = vmatmul.f32.gmra.mxu0 %v156
  %v182 = vpop.f32.mrf.mxu0
  %v183 = vadd.f32 %v117, %v182
  %184 = vmatmul.f32.gmra.mxu0 %v158
  %v185 = vpop.f32.mrf.mxu0
  %v186 = vadd.f32 %v120, %v185
  %187 = vmatmul.f32.gmra.mxu0 %v160
  %v188 = vpop.f32.mrf.mxu0
  %v189 = vadd.f32 %v123, %v188
  %190 = vdwg.mxu0
  %191 = vmatpush.msra.mxu0 0.0
  %192 = vmatpush.msra.mxu0 0.0
  %193 = vmatpush.msra.mxu0 0.0
  %194 = vmatpush.msra.mxu0 0.0
  %195 = vmatpush.msra.mxu0 0.0
  %196 = vmatpush.msra.mxu0 0.0
  %197 = vmatpush.msra.mxu0 0.0
  %198 = vmatpush.msra.mxu0 0.0
  %199 = vmatpush.msra.mxu0 0.0
  %200 = vmatpush.msra.mxu0 0.0
  %201 = vmatpush.msra.mxu0 0.0
  %202 = vmatpush.msra.mxu0 0.0
  %203 = vmatpush.msra.mxu0 %v61
  %204 = vmatpush.msra.mxu0 %v59
  %205 = vmatpush.msra.mxu0 %v57
  %206 = vmatpush.msra.mxu0 %v55
  %207 = vmatmul.f32.gmra.mxu0 %v154
  %v208 = vpop.f32.mrf.mxu0
  %v209 = vadd.f32 %v143, %v208
  %210 = vmatmul.f32.gmra.mxu0 %v156
  %v211 = vpop.f32.mrf.mxu0
  %v212 = vadd.f32 %v146, %v211
  %213 = vmatmul.f32.gmra.mxu0 %v158
  %v214 = vpop.f32.mrf.mxu0
  %v215 = vadd.f32 %v149, %v214
  %216 = vmatmul.f32.gmra.mxu0 %v160
  %v217 = vpop.f32.mrf.mxu0
  %v218 = vadd.f32 %v152, %v217
  %219 = vdwg.mxu0
  %vm220 = vcmask 1045504
  %v221 = vrot.slane %v48, 2
  %v222 = vrot.slane %v49, 2
  %v223 = vsel %vm220, %v221, %v222
  %v224 = vrot.slane %v50, 2
  %v225 = vsel %vm220, %v222, %v224
  %v226 = vrot.slane %v51, 2
  %v227 = vrot.slane %v52, 2
  %v228 = vsel %vm220, %v226, %v227
  %v229 = vrot.slane %v53, 2
  %v230 = vsel %vm220, %v227, %v229
  %v231 = vld [vmem:[%s5 + $0x80] sm:$0xff]
  %v232 = vld [vmem:[%s5 + $0x88] sm:$0xff]
  %v233 = vld [vmem:[%s5 + $0x90] sm:$0xff]
  %v234 = vld [vmem:[%s5 + $0x98] sm:$0xff]
  %v235 = vld [vmem:[%s5 + $0xa0] sm:$0xff]
  %v236 = vld [vmem:[%s5 + $0xa8] sm:$0xff]
  %v237 = vld [vmem:[%s5 + $0xb0] sm:$0xff]
  %v238 = vld [vmem:[%s5 + $0xb8] sm:$0xff]
  %v239 = vsel %vm87, %v223, 0
  %v241 = vsel %vm87, %v225, 0
  %v243 = vsel %vm87, %v228, 0
  %v245 = vsel %vm87, %v230, 0
  %247 = vmatpush.msra.mxu0 0.0
  %248 = vmatpush.msra.mxu0 0.0
  %249 = vmatpush.msra.mxu0 0.0
  %250 = vmatpush.msra.mxu0 0.0
  %251 = vmatpush.msra.mxu0 0.0
  %252 = vmatpush.msra.mxu0 0.0
  %253 = vmatpush.msra.mxu0 0.0
  %254 = vmatpush.msra.mxu0 0.0
  %255 = vmatpush.msra.mxu0 0.0
  %256 = vmatpush.msra.mxu0 0.0
  %257 = vmatpush.msra.mxu0 0.0
  %258 = vmatpush.msra.mxu0 0.0
  %259 = vmatpush.msra.mxu0 %v237
  %260 = vmatpush.msra.mxu0 %v235
  %261 = vmatpush.msra.mxu0 %v233
  %262 = vmatpush.msra.mxu0 %v231
  %263 = vmatmul.f32.gmra.mxu0 %v239
  %v264 = vpop.f32.mrf.mxu0
  %v265 = vadd.f32 0.0, %v264
  %266 = vmatmul.f32.gmra.mxu0 %v241
  %v267 = vpop.f32.mrf.mxu0
  %v268 = vadd.f32 0.0, %v267
  %269 = vmatmul.f32.gmra.mxu0 %v243
  %v270 = vpop.f32.mrf.mxu0
  %v271 = vadd.f32 0.0, %v270
  %272 = vmatmul.f32.gmra.mxu0 %v245
  %v273 = vpop.f32.mrf.mxu0
  %v274 = vadd.f32 0.0, %v273
  %275 = vdwg.mxu0
  %276 = vmatpush.msra.mxu0 0.0
  %277 = vmatpush.msra.mxu0 0.0
  %278 = vmatpush.msra.mxu0 0.0
  %279 = vmatpush.msra.mxu0 0.0
  %280 = vmatpush.msra.mxu0 0.0
  %281 = vmatpush.msra.mxu0 0.0
  %282 = vmatpush.msra.mxu0 0.0
  %283 = vmatpush.msra.mxu0 0.0
  %284 = vmatpush.msra.mxu0 0.0
  %285 = vmatpush.msra.mxu0 0.0
  %286 = vmatpush.msra.mxu0 0.0
  %287 = vmatpush.msra.mxu0 0.0
  %288 = vmatpush.msra.mxu0 %v238
  %289 = vmatpush.msra.mxu0 %v236
  %290 = vmatpush.msra.mxu0 %v234
  %291 = vmatpush.msra.mxu0 %v232
  %292 = vmatmul.f32.gmra.mxu0 %v239
  %v293 = vpop.f32.mrf.mxu0
  %v294 = vadd.f32 0.0, %v293
  %295 = vmatmul.f32.gmra.mxu0 %v241
  %v296 = vpop.f32.mrf.mxu0
  %v297 = vadd.f32 0.0, %v296
  %298 = vmatmul.f32.gmra.mxu0 %v243
  %v299 = vpop.f32.mrf.mxu0
  %v300 = vadd.f32 0.0, %v299
  %301 = vmatmul.f32.gmra.mxu0 %v245
  %v302 = vpop.f32.mrf.mxu0
  %v303 = vadd.f32 0.0, %v302
  %304 = vdwg.mxu0
  %v305 = vadd.f32 %v180, %v265
  %v306 = vadd.f32 %v209, %v294
  %v307 = vadd.f32 %v183, %v268
  %v308 = vadd.f32 %v212, %v297
  %v309 = vadd.f32 %v186, %v271
  %v310 = vadd.f32 %v215, %v300
  %v311 = vadd.f32 %v189, %v274
  %v312 = vadd.f32 %v218, %v303
  %vm313 = vcmask 1044480
  %v314 = vrot.slane %v48, 3
  %v315 = vrot.slane %v49, 3
  %v316 = vsel %vm313, %v314, %v315
  %v317 = vrot.slane %v50, 3
  %v318 = vsel %vm313, %v315, %v317
  %v319 = vrot.slane %v51, 3
  %v320 = vrot.slane %v52, 3
  %v321 = vsel %vm313, %v319, %v320
  %v322 = vrot.slane %v53, 3
  %v323 = vsel %vm313, %v320, %v322
  %v324 = vld [vmem:[%s5 + $0xc0] sm:$0xff]
  %v325 = vld [vmem:[%s5 + $0xc8] sm:$0xff]
  %v326 = vld [vmem:[%s5 + $0xd0] sm:$0xff]
  %v327 = vld [vmem:[%s5 + $0xd8] sm:$0xff]
  %v328 = vld [vmem:[%s5 + $0xe0] sm:$0xff]
  %v329 = vld [vmem:[%s5 + $0xe8] sm:$0xff]
  %v330 = vld [vmem:[%s5 + $0xf0] sm:$0xff]
  %v331 = vld [vmem:[%s5 + $0xf8] sm:$0xff]
  %v332 = vsel %vm87, %v316, 0
  %v334 = vsel %vm87, %v318, 0
  %v336 = vsel %vm87, %v321, 0
  %v338 = vsel %vm87, %v323, 0
  %340 = vmatpush.msra.mxu0 0.0
  %341 = vmatpush.msra.mxu0 0.0
  %342 = vmatpush.msra.mxu0 0.0
  %343 = vmatpush.msra.mxu0 0.0
  %344 = vmatpush.msra.mxu0 0.0
  %345 = vmatpush.msra.mxu0 0.0
  %346 = vmatpush.msra.mxu0 0.0
  %347 = vmatpush.msra.mxu0 0.0
  %348 = vmatpush.msra.mxu0 0.0
  %349 = vmatpush.msra.mxu0 0.0
  %350 = vmatpush.msra.mxu0 0.0
  %351 = vmatpush.msra.mxu0 0.0
  %352 = vmatpush.msra.mxu0 %v330
  %353 = vmatpush.msra.mxu0 %v328
  %354 = vmatpush.msra.mxu0 %v326
  %355 = vmatpush.msra.mxu0 %v324
  %356 = vmatmul.f32.gmra.mxu0 %v332
  %v357 = vpop.f32.mrf.mxu0
  %v358 = vadd.f32 0.0, %v357
  %359 = vmatmul.f32.gmra.mxu0 %v334
  %v360 = vpop.f32.mrf.mxu0
  %v361 = vadd.f32 0.0, %v360
  %362 = vmatmul.f32.gmra.mxu0 %v336
  %v363 = vpop.f32.mrf.mxu0
  %v364 = vadd.f32 0.0, %v363
  %365 = vmatmul.f32.gmra.mxu0 %v338
  %v366 = vpop.f32.mrf.mxu0
  %v367 = vadd.f32 0.0, %v366
  %368 = vdwg.mxu0
  %369 = vmatpush.msra.mxu0 0.0
  %370 = vmatpush.msra.mxu0 0.0
  %371 = vmatpush.msra.mxu0 0.0
  %372 = vmatpush.msra.mxu0 0.0
  %373 = vmatpush.msra.mxu0 0.0
  %374 = vmatpush.msra.mxu0 0.0
  %375 = vmatpush.msra.mxu0 0.0
  %376 = vmatpush.msra.mxu0 0.0
  %377 = vmatpush.msra.mxu0 0.0
  %378 = vmatpush.msra.mxu0 0.0
  %379 = vmatpush.msra.mxu0 0.0
  %380 = vmatpush.msra.mxu0 0.0
  %381 = vmatpush.msra.mxu0 %v331
  %382 = vmatpush.msra.mxu0 %v329
  %383 = vmatpush.msra.mxu0 %v327
  %384 = vmatpush.msra.mxu0 %v325
  %385 = vmatmul.f32.gmra.mxu0 %v332
  %v386 = vpop.f32.mrf.mxu0
  %v387 = vadd.f32 0.0, %v386
  %388 = vmatmul.f32.gmra.mxu0 %v334
  %v389 = vpop.f32.mrf.mxu0
  %v390 = vadd.f32 0.0, %v389
  %391 = vmatmul.f32.gmra.mxu0 %v336
  %v392 = vpop.f32.mrf.mxu0
  %v393 = vadd.f32 0.0, %v392
  %394 = vmatmul.f32.gmra.mxu0 %v338
  %v395 = vpop.f32.mrf.mxu0
  %v396 = vadd.f32 0.0, %v395
  %397 = vdwg.mxu0
  %v398 = vadd.f32 %v305, %v358
  %v399 = vadd.f32 %v306, %v387
  %v400 = vadd.f32 %v307, %v361
  %v401 = vadd.f32 %v308, %v390
  %v402 = vadd.f32 %v309, %v364
  %v403 = vadd.f32 %v310, %v393
  %v404 = vadd.f32 %v311, %v367
  %v405 = vadd.f32 %v312, %v396
  %vm406 = vcmask 1043456
  %v407 = vrot.slane %v48, 4
  %v408 = vrot.slane %v49, 4
  %v409 = vsel %vm406, %v407, %v408
  %v410 = vrot.slane %v50, 4
  %v411 = vsel %vm406, %v408, %v410
  %v412 = vrot.slane %v51, 4
  %v413 = vrot.slane %v52, 4
  %v414 = vsel %vm406, %v412, %v413
  %v415 = vrot.slane %v53, 4
  %v416 = vsel %vm406, %v413, %v415
  %v417 = vld [vmem:[%s5 + $0x100] sm:$0xff]
  %v418 = vld [vmem:[%s5 + $0x108] sm:$0xff]
  %v419 = vld [vmem:[%s5 + $0x110] sm:$0xff]
  %v420 = vld [vmem:[%s5 + $0x118] sm:$0xff]
  %v421 = vld [vmem:[%s5 + $0x120] sm:$0xff]
  %v422 = vld [vmem:[%s5 + $0x128] sm:$0xff]
  %v423 = vld [vmem:[%s5 + $0x130] sm:$0xff]
  %v424 = vld [vmem:[%s5 + $0x138] sm:$0xff]
  %v425 = vsel %vm87, %v409, 0
  %v427 = vsel %vm87, %v411, 0
  %v429 = vsel %vm87, %v414, 0
  %v431 = vsel %vm87, %v416, 0
  %433 = vmatpush.msra.mxu0 0.0
  %434 = vmatpush.msra.mxu0 0.0
  %435 = vmatpush.msra.mxu0 0.0
  %436 = vmatpush.msra.mxu0 0.0
  %437 = vmatpush.msra.mxu0 0.0
  %438 = vmatpush.msra.mxu0 0.0
  %439 = vmatpush.msra.mxu0 0.0
  %440 = vmatpush.msra.mxu0 0.0
  %441 = vmatpush.msra.mxu0 0.0
  %442 = vmatpush.msra.mxu0 0.0
  %443 = vmatpush.msra.mxu0 0.0
  %444 = vmatpush.msra.mxu0 0.0
  %445 = vmatpush.msra.mxu0 %v423
  %446 = vmatpush.msra.mxu0 %v421
  %447 = vmatpush.msra.mxu0 %v419
  %448 = vmatpush.msra.mxu0 %v417
  %449 = vmatmul.f32.gmra.mxu0 %v425
  %v450 = vpop.f32.mrf.mxu0
  %v451 = vadd.f32 0.0, %v450
  %452 = vmatmul.f32.gmra.mxu0 %v427
  %v453 = vpop.f32.mrf.mxu0
  %v454 = vadd.f32 0.0, %v453
  %455 = vmatmul.f32.gmra.mxu0 %v429
  %v456 = vpop.f32.mrf.mxu0
  %v457 = vadd.f32 0.0, %v456
  %458 = vmatmul.f32.gmra.mxu0 %v431
  %v459 = vpop.f32.mrf.mxu0
  %v460 = vadd.f32 0.0, %v459
  %461 = vdwg.mxu0
  %462 = vmatpush.msra.mxu0 0.0
  %463 = vmatpush.msra.mxu0 0.0
  %464 = vmatpush.msra.mxu0 0.0
  %465 = vmatpush.msra.mxu0 0.0
  %466 = vmatpush.msra.mxu0 0.0
  %467 = vmatpush.msra.mxu0 0.0
  %468 = vmatpush.msra.mxu0 0.0
  %469 = vmatpush.msra.mxu0 0.0
  %470 = vmatpush.msra.mxu0 0.0
  %471 = vmatpush.msra.mxu0 0.0
  %472 = vmatpush.msra.mxu0 0.0
  %473 = vmatpush.msra.mxu0 0.0
  %474 = vmatpush.msra.mxu0 %v424
  %475 = vmatpush.msra.mxu0 %v422
  %476 = vmatpush.msra.mxu0 %v420
  %477 = vmatpush.msra.mxu0 %v418
  %478 = vmatmul.f32.gmra.mxu0 %v425
  %v479 = vpop.f32.mrf.mxu0
  %v480 = vadd.f32 0.0, %v479
  %481 = vmatmul.f32.gmra.mxu0 %v427
  %v482 = vpop.f32.mrf.mxu0
  %v483 = vadd.f32 0.0, %v482
  %484 = vmatmul.f32.gmra.mxu0 %v429
  %v485 = vpop.f32.mrf.mxu0
  %v486 = vadd.f32 0.0, %v485
  %487 = vmatmul.f32.gmra.mxu0 %v431
  %v488 = vpop.f32.mrf.mxu0
  %v489 = vadd.f32 0.0, %v488
  %490 = vdwg.mxu0
  %v491 = vadd.f32 %v398, %v451
  %v492 = vadd.f32 %v399, %v480
  %v493 = vadd.f32 %v400, %v454
  %v494 = vadd.f32 %v401, %v483
  %v495 = vadd.f32 %v402, %v457
  %v496 = vadd.f32 %v403, %v486
  %v497 = vadd.f32 %v404, %v460
  %v498 = vadd.f32 %v405, %v489
  %v499 = vld [vmem:[%s6] sm:$0x3]
  %v501 = vperm.slane %v499, 0
  %v502 = vperm.slane %v499, 1
  %v505 = vadd.f32 %v491, %v501
  %v506 = vadd.f32 %v492, %v502
  %v507 = vadd.f32 %v493, %v501
  %v508 = vadd.f32 %v494, %v502
  %v509 = vadd.f32 %v495, %v501
  %v510 = vadd.f32 %v496, %v502
  %v511 = vadd.f32 %v497, %v501
  %v512 = vadd.f32 %v498, %v502
  %v513 = vmax.f32 %v505, 0.0
  %v514 = vmax.f32 %v506, 0.0
  %v515 = vmax.f32 %v507, 0.0
  %v516 = vmax.f32 %v508, 0.0
  %v517 = vmax.f32 %v509, 0.0
  %v518 = vmax.f32 %v510, 0.0
  %v519 = vmax.f32 %v511, 0.0
  %v520 = vmax.f32 %v512, 0.0
  %522 = vset.pattern.permute.xlu0 0
  %523 = vperm.xlu0 %522, %v42
  %v524 = vpop.permute.xlu0 %523
  %527 = vset.pattern.permute.xlu0 0
  %528 = vperm.xlu0 %527, %v43
  %v529 = vpop.permute.xlu0 %528
  %532 = vset.pattern.permute.xlu0 0
  %533 = vperm.xlu0 %532, %v44
  %v534 = vpop.permute.xlu0 %533
  %537 = vset.pattern.permute.xlu0 0
  %538 = vperm.xlu0 %537, %v45
  %v539 = vpop.permute.xlu0 %538
  %v541 = vmul.f32 %v513, %v524
  %v542 = vmul.f32 %v514, %v524
  %v543 = vmul.f32 %v515, %v529
  %v544 = vmul.f32 %v516, %v529
  %v545 = vmul.f32 %v517, %v534
  %v546 = vmul.f32 %v518, %v534
  %v547 = vmul.f32 %v519, %v539
  %v548 = vmul.f32 %v520, %v539
  %v549 = vld [vmem:[%s7] sm:$0xff]
  %v550 = vld [vmem:[%s7 + $0x8] sm:$0xff]
  %v551 = vld [vmem:[%s7 + $0x10] sm:$0xff]
  %v552 = vld [vmem:[%s7 + $0x18] sm:$0xff]
  %v553 = vld [vmem:[%s7 + $0x20] sm:$0xff]
  %v554 = vld [vmem:[%s7 + $0x28] sm:$0xff]
  %v555 = vld [vmem:[%s7 + $0x30] sm:$0xff]
  %v556 = vld [vmem:[%s7 + $0x38] sm:$0xff]
  %v557 = vld [vmem:[%s7 + $0x40] sm:$0xff]
  %v558 = vld [vmem:[%s7 + $0x48] sm:$0xff]
  %v559 = vld [vmem:[%s7 + $0x50] sm:$0xff]
  %v560 = vld [vmem:[%s7 + $0x58] sm:$0xff]
  %v561 = vld [vmem:[%s7 + $0x60] sm:$0xff]
  %v562 = vld [vmem:[%s7 + $0x68] sm:$0xff]
  %v563 = vld [vmem:[%s7 + $0x70] sm:$0xff]
  %v564 = vld [vmem:[%s7 + $0x78] sm:$0xff]
  %v565 = vld [vmem:[%s7 + $0x80] sm:$0xff]
  %v566 = vld [vmem:[%s7 + $0x88] sm:$0xff]
  %v567 = vld [vmem:[%s7 + $0x90] sm:$0xff]
  %v568 = vld [vmem:[%s7 + $0x98] sm:$0xff]
  %v569 = vld [vmem:[%s7 + $0xa0] sm:$0xff]
  %v570 = vld [vmem:[%s7 + $0xa8] sm:$0xff]
  %v571 = vld [vmem:[%s7 + $0xb0] sm:$0xff]
  %v572 = vld [vmem:[%s7 + $0xb8] sm:$0xff]
  %v573 = vld [vmem:[%s7 + $0xc0] sm:$0xff]
  %v574 = vld [vmem:[%s7 + $0xc8] sm:$0xff]
  %v575 = vld [vmem:[%s7 + $0xd0] sm:$0xff]
  %v576 = vld [vmem:[%s7 + $0xd8] sm:$0xff]
  %v577 = vld [vmem:[%s7 + $0xe0] sm:$0xff]
  %v578 = vld [vmem:[%s7 + $0xe8] sm:$0xff]
  %v579 = vld [vmem:[%s7 + $0xf0] sm:$0xff]
  %v580 = vld [vmem:[%s7 + $0xf8] sm:$0xff]
  %v581 = vld [vmem:[%s8] sm:$0x1]
  %v583 = vperm.slane %v581, 0
  %585 = vmatpush.msra.mxu0 %v564
  %586 = vmatpush.msra.mxu0 %v563
  %587 = vmatpush.msra.mxu0 %v562
  %588 = vmatpush.msra.mxu0 %v561
  %589 = vmatpush.msra.mxu0 %v560
  %590 = vmatpush.msra.mxu0 %v559
  %591 = vmatpush.msra.mxu0 %v558
  %592 = vmatpush.msra.mxu0 %v557
  %593 = vmatpush.msra.mxu0 %v556
  %594 = vmatpush.msra.mxu0 %v555
  %595 = vmatpush.msra.mxu0 %v554
  %596 = vmatpush.msra.mxu0 %v553
  %597 = vmatpush.msra.mxu0 %v552
  %598 = vmatpush.msra.mxu0 %v551
  %599 = vmatpush.msra.mxu0 %v550
  %600 = vmatpush.msra.mxu0 %v549
  %601 = vmatmul.f32.gmra.mxu0 %v541
  %v602 = vpop.f32.mrf.mxu0
  %v603 = vadd.f32 %v583, %v602
  %604 = vmatmul.f32.gmra.mxu0 %v543
  %v605 = vpop.f32.mrf.mxu0
  %v606 = vadd.f32 %v583, %v605
  %607 = vmatmul.f32.gmra.mxu0 %v545
  %v608 = vpop.f32.mrf.mxu0
  %v609 = vadd.f32 %v583, %v608
  %610 = vmatmul.f32.gmra.mxu0 %v547
  %v611 = vpop.f32.mrf.mxu0
  %v612 = vadd.f32 %v583, %v611
  %613 = vdwg.mxu0
  %614 = vmatpush.msra.mxu0 %v580
  %615 = vmatpush.msra.mxu0 %v579
  %616 = vmatpush.msra.mxu0 %v578
  %617 = vmatpush.msra.mxu0 %v577
  %618 = vmatpush.msra.mxu0 %v576
  %619 = vmatpush.msra.mxu0 %v575
  %620 = vmatpush.msra.mxu0 %v574
  %621 = vmatpush.msra.mxu0 %v573
  %622 = vmatpush.msra.mxu0 %v572
  %623 = vmatpush.msra.mxu0 %v571
  %624 = vmatpush.msra.mxu0 %v570
  %625 = vmatpush.msra.mxu0 %v569
  %626 = vmatpush.msra.mxu0 %v568
  %627 = vmatpush.msra.mxu0 %v567
  %628 = vmatpush.msra.mxu0 %v566
  %629 = vmatpush.msra.mxu0 %v565
  %630 = vmatmul.f32.gmra.mxu0 %v542
  %v631 = vpop.f32.mrf.mxu0
  %v632 = vadd.f32 %v603, %v631
  %633 = vmatmul.f32.gmra.mxu0 %v544
  %v634 = vpop.f32.mrf.mxu0
  %v635 = vadd.f32 %v606, %v634
  %636 = vmatmul.f32.gmra.mxu0 %v546
  %v637 = vpop.f32.mrf.mxu0
  %v638 = vadd.f32 %v609, %v637
  %639 = vmatmul.f32.gmra.mxu0 %v548
  %v640 = vpop.f32.mrf.mxu0
  %v641 = vadd.f32 %v612, %v640
  %642 = vdwg.mxu0
  %643 = vxpose.xlu0.b32.start [1/16] %v632, 128
  %644 = vxpose.xlu0.b32.cont [2/16] %v635, 128
  %645 = vxpose.xlu0.b32.cont [3/16] 0.0, 128
  %646 = vxpose.xlu0.b32.cont [4/16] 0.0, 128
  %647 = vxpose.xlu0.b32.cont [5/16] 0.0, 128
  %648 = vxpose.xlu0.b32.cont [6/16] 0.0, 128
  %649 = vxpose.xlu0.b32.cont [7/16] 0.0, 128
  %650 = vxpose.xlu0.b32.cont [8/16] 0.0, 128
  %651 = vxpose.xlu0.b32.cont [9/16] 0.0, 128
  %652 = vxpose.xlu0.b32.cont [10/16] 0.0, 128
  %653 = vxpose.xlu0.b32.cont [11/16] 0.0, 128
  %654 = vxpose.xlu0.b32.cont [12/16] 0.0, 128
  %655 = vxpose.xlu0.b32.cont [13/16] 0.0, 128
  %656 = vxpose.xlu0.b32.cont [14/16] 0.0, 128
  %657 = vxpose.xlu0.b32.cont [15/16] 0.0, 128
  %658 = vxpose.xlu0.b32.end [16/16] 0.0, 128
  %v659 = vpop.trf.xlu0
  %v660 = vpop.trf.xlu0
  %v661 = vpop.trf.xlu0
  %v662 = vpop.trf.xlu0
  %v663 = vpop.trf.xlu0
  %v664 = vpop.trf.xlu0
  %v665 = vpop.trf.xlu0
  %v666 = vpop.trf.xlu0
  %v667 = vpop.trf.xlu0
  %v668 = vpop.trf.xlu0
  %v669 = vpop.trf.xlu0
  %v670 = vpop.trf.xlu0
  %v671 = vpop.trf.xlu0
  %v672 = vpop.trf.xlu0
  %v673 = vpop.trf.xlu0
  %v674 = vpop.trf.xlu0
  %675 = vxpose.xlu0.b32.start [1/16] %v638, 128
  %676 = vxpose.xlu0.b32.cont [2/16] %v641, 128
  %677 = vxpose.xlu0.b32.cont [3/16] 0.0, 128
  %678 = vxpose.xlu0.b32.cont [4/16] 0.0, 128
  %679 = vxpose.xlu0.b32.cont [5/16] 0.0, 128
  %680 = vxpose.xlu0.b32.cont [6/16] 0.0, 128
  %681 = vxpose.xlu0.b32.cont [7/16] 0.0, 128
  %682 = vxpose.xlu0.b32.cont [8/16] 0.0, 128
  %683 = vxpose.xlu0.b32.cont [9/16] 0.0, 128
  %684 = vxpose.xlu0.b32.cont [10/16] 0.0, 128
  %685 = vxpose.xlu0.b32.cont [11/16] 0.0, 128
  %686 = vxpose.xlu0.b32.cont [12/16] 0.0, 128
  %687 = vxpose.xlu0.b32.cont [13/16] 0.0, 128
  %688 = vxpose.xlu0.b32.cont [14/16] 0.0, 128
  %689 = vxpose.xlu0.b32.cont [15/16] 0.0, 128
  %690 = vxpose.xlu0.b32.end [16/16] 0.0, 128
  %v691 = vpop.trf.xlu0
  %v692 = vpop.trf.xlu0
  %v693 = vpop.trf.xlu0
  %v694 = vpop.trf.xlu0
  %v695 = vpop.trf.xlu0
  %v696 = vpop.trf.xlu0
  %v697 = vpop.trf.xlu0
  %v698 = vpop.trf.xlu0
  %v699 = vpop.trf.xlu0
  %v700 = vpop.trf.xlu0
  %v701 = vpop.trf.xlu0
  %v702 = vpop.trf.xlu0
  %v703 = vpop.trf.xlu0
  %v704 = vpop.trf.xlu0
  %v705 = vpop.trf.xlu0
  %v706 = vpop.trf.xlu0
  %vm707 = vcmp.gt.f32.partialorder %v46, 0.0
  %vm708 = vcmp.gt.f32.partialorder %v47, 0.0
  %v709 = vsel %vm707, 1, 0
  %v710 = vsel %vm708, 1, 0
  %v711 = vperm.slane %v709, 0
  %v712 = vperm.slane %v710, 0
  %vm713 = vcmp.eq.s32.totalorder %v711, 1
  %vm714 = vcmp.eq.s32.totalorder %v712, 1
  %v715 = vsel %vm713, %v659, -1e+30
  %v716 = vsel %vm714, %v691, -1e+30
  %vm717 = vcmask 130048
  %v718 = vsel %vm717, %v715, -inf
  %719 = vmax.xlane.f32.xlu0 %v718
  %v720 = vpop.xlane.xlu0 %719
  %v721 = vsel %vm717, %v716, -inf
  %722 = vmax.xlane.f32.xlu0 %v721
  %v723 = vpop.xlane.xlu0 %722
  %v724 = vsub.f32 %v715, %v720
  %v725 = vsub.f32 %v716, %v723
  %v726 = vmul.f32 %v724, 1.442695
  %v727 = vpow.pop %v726
  %v728 = vmul.f32 %v725, 1.442695
  %v729 = vpow.pop %v728
  %v732 = vperm.slane %v46, 0
  %v733 = vperm.slane %v47, 0
  %v736 = vmul.f32 %v727, %v732
  %v737 = vmul.f32 %v729, %v733
  %v738 = vsel %vm717, %v736, 0.0
  %739 = vadd.xlane.f32.xlu0 %v738
  %v740 = vpop.xlane.xlu0 %739
  %v741 = vsel %vm717, %v737, 0.0
  %742 = vadd.xlane.f32.xlu0 %v741
  %v743 = vpop.xlane.xlu0 %742
  %v744 = vadd.f32 %v740, 1e-08
  %v745 = vadd.f32 %v743, 1e-08
  %v746 = vrcp.pop %v744
  %v747 = vmul.f32 %v744, %v746
  %v748 = vsub.f32 1.0, %v747
  %v749 = vmul.f32 %v746, %v748
  %v750 = vadd.f32 %v746, %v749
  %vm751 = vweird.f32 %v744
  %vm752 = vweird.f32 %v746
  %vm753 = vmor %vm751, %vm752
  %v754 = vsel %vm753, %v746, %v750
  %v755 = vand.u32 2147483647, %v744
  %vm756 = vcmp.eq.f32.partialorder %v755, 8.507059e+37
  %v757 = vand.u32 %v744, 2147483648
  %v758 = vor.u32 1.1754944e-38, %v757
  %v759 = vsel %vm756, %v758, %v754
  %v760 = vrcp.pop %v745
  %v761 = vmul.f32 %v745, %v760
  %v762 = vsub.f32 1.0, %v761
  %v763 = vmul.f32 %v760, %v762
  %v764 = vadd.f32 %v760, %v763
  %vm765 = vweird.f32 %v745
  %vm766 = vweird.f32 %v760
  %vm767 = vmor %vm765, %vm766
  %v768 = vsel %vm767, %v760, %v764
  %v769 = vand.u32 2147483647, %v745
  %vm770 = vcmp.eq.f32.partialorder %v769, 8.507059e+37
  %v771 = vand.u32 %v745, 2147483648
  %v772 = vor.u32 1.1754944e-38, %v771
  %v773 = vsel %vm770, %v772, %v768
  %v774 = vmul.f32 %v736, %v759
  %v775 = vmul.f32 %v737, %v773
  %v776 = vld [vmem:[%s3] sm:$0xff]
  %v777 = vld [vmem:[%s3 + $0x8] sm:$0xff]
  %v779 = vsel %vm717, %v774, 0
  %v782 = vsel %vm717, %v775, 0
  %784 = vmatpush.msra.mxu0 0.0
  %785 = vmatpush.msra.mxu0 0.0
  %786 = vmatpush.msra.mxu0 0.0
  %787 = vmatpush.msra.mxu0 0.0
  %788 = vmatpush.msra.mxu0 0.0
  %789 = vmatpush.msra.mxu0 0.0
  %790 = vmatpush.msra.mxu0 0.0
  %791 = vmatpush.msra.mxu0 0.0
  %792 = vmatpush.msra.mxu0 0.0
  %793 = vmatpush.msra.mxu0 0.0
  %794 = vmatpush.msra.mxu0 0.0
  %795 = vmatpush.msra.mxu0 0.0
  %796 = vmatpush.msra.mxu0 0.0
  %797 = vmatpush.msra.mxu0 0.0
  %798 = vmatpush.msra.mxu0 %v777
  %799 = vmatpush.msra.mxu0 %v776
  %800 = vmatmul.f32.gmra.mxu0 %v779
  %v801 = vpop.f32.mrf.mxu0
  %v802 = vadd.f32 0.0, %v801
  %803 = vmatmul.f32.gmra.mxu0 %v782
  %v804 = vpop.f32.mrf.mxu0
  %v805 = vadd.f32 0.0, %v804
  %806 = vdwg.mxu0
  %v807 = vld [vmem:[%s4] sm:$0xff]
  %v808 = vld [vmem:[%s4 + $0x8] sm:$0xff]
  %809 = vmatpush.msra.mxu0 0.0
  %810 = vmatpush.msra.mxu0 0.0
  %811 = vmatpush.msra.mxu0 0.0
  %812 = vmatpush.msra.mxu0 0.0
  %813 = vmatpush.msra.mxu0 0.0
  %814 = vmatpush.msra.mxu0 0.0
  %815 = vmatpush.msra.mxu0 0.0
  %816 = vmatpush.msra.mxu0 0.0
  %817 = vmatpush.msra.mxu0 0.0
  %818 = vmatpush.msra.mxu0 0.0
  %819 = vmatpush.msra.mxu0 0.0
  %820 = vmatpush.msra.mxu0 0.0
  %821 = vmatpush.msra.mxu0 0.0
  %822 = vmatpush.msra.mxu0 0.0
  %823 = vmatpush.msra.mxu0 %v808
  %824 = vmatpush.msra.mxu0 %v807
  %825 = vmatmul.f32.gmra.mxu0 %v779
  %v826 = vpop.f32.mrf.mxu0
  %v827 = vadd.f32 0.0, %v826
  %828 = vmatmul.f32.gmra.mxu0 %v782
  %v829 = vpop.f32.mrf.mxu0
  %v830 = vadd.f32 0.0, %v829
  %831 = vdwg.mxu0
  %v834 = vrot.slane %v827, 3
  %v835 = vrot.slane %v830, 3
  %v838 = vmul.f32 %v802, %v834
  %v839 = vmul.f32 %v805, %v835
  %vm840 = vcmask 124928
  %v841 = vsel %vm840, %v838, 0.0
  %842 = vadd.xlane.f32.xlu0 %v841
  %v843 = vpop.xlane.xlu0 %842
  %v844 = vsel %vm840, %v839, 0.0
  %845 = vadd.xlane.f32.xlu0 %v844
  %v846 = vpop.xlane.xlu0 %845
  %v847 = vadd.f32 %v843, 1e-08
  %v848 = vadd.f32 %v846, 1e-08
  %v849 = vrcp.pop %v847
  %v850 = vmul.f32 %v847, %v849
  %v851 = vsub.f32 1.0, %v850
  %v852 = vmul.f32 %v849, %v851
  %v853 = vadd.f32 %v849, %v852
  %vm854 = vweird.f32 %v847
  %vm855 = vweird.f32 %v849
  %vm856 = vmor %vm854, %vm855
  %v857 = vsel %vm856, %v849, %v853
  %v858 = vand.u32 2147483647, %v847
  %vm859 = vcmp.eq.f32.partialorder %v858, 8.507059e+37
  %v860 = vand.u32 %v847, 2147483648
  %v861 = vor.u32 1.1754944e-38, %v860
  %v862 = vsel %vm859, %v861, %v857
  %v863 = vrcp.pop %v848
  %v864 = vmul.f32 %v848, %v863
  %v865 = vsub.f32 1.0, %v864
  %v866 = vmul.f32 %v863, %v865
  %v867 = vadd.f32 %v863, %v866
  %vm868 = vweird.f32 %v848
  %vm869 = vweird.f32 %v863
  %vm870 = vmor %vm868, %vm869
  %v871 = vsel %vm870, %v863, %v867
  %v872 = vand.u32 2147483647, %v848
  %vm873 = vcmp.eq.f32.partialorder %v872, 8.507059e+37
  %v874 = vand.u32 %v848, 2147483648
  %v875 = vor.u32 1.1754944e-38, %v874
  %v876 = vsel %vm873, %v875, %v871
  %v877 = vmul.f32 %v838, %v862
  %v878 = vmul.f32 %v839, %v876
  %879 = vst.msk [vmem:[%s12] sm:$0x7] %vm840, %v877
  %880 = vst.msk [vmem:[%s12 + $0x4] sm:$0x7] %vm840, %v878
  %881 = vxpose.xlu0.b32.start [1/16] %v877, 128
  %882 = vxpose.xlu0.b32.cont [2/16] 0.0, 128
  %883 = vxpose.xlu0.b32.cont [3/16] 0.0, 128
  %884 = vxpose.xlu0.b32.cont [4/16] 0.0, 128
  %885 = vxpose.xlu0.b32.cont [5/16] 0.0, 128
  %886 = vxpose.xlu0.b32.cont [6/16] 0.0, 128
  %887 = vxpose.xlu0.b32.cont [7/16] 0.0, 128
  %888 = vxpose.xlu0.b32.cont [8/16] 0.0, 128
  %889 = vxpose.xlu0.b32.cont [9/16] 0.0, 128
  %890 = vxpose.xlu0.b32.cont [10/16] 0.0, 128
  %891 = vxpose.xlu0.b32.cont [11/16] 0.0, 128
  %892 = vxpose.xlu0.b32.cont [12/16] 0.0, 128
  %893 = vxpose.xlu0.b32.cont [13/16] 0.0, 128
  %894 = vxpose.xlu0.b32.cont [14/16] 0.0, 128
  %895 = vxpose.xlu0.b32.cont [15/16] 0.0, 128
  %896 = vxpose.xlu0.b32.end [16/16] 0.0, 128
  %v897 = vpop.trf.xlu0
  %v898 = vpop.trf.xlu0
  %v899 = vpop.trf.xlu0
  %v900 = vpop.trf.xlu0
  %v901 = vpop.trf.xlu0
  %v902 = vpop.trf.xlu0
  %v903 = vpop.trf.xlu0
  %v904 = vpop.trf.xlu0
  %v905 = vpop.trf.xlu0
  %v906 = vpop.trf.xlu0
  %v907 = vpop.trf.xlu0
  %v908 = vpop.trf.xlu0
  %v909 = vpop.trf.xlu0
  %v910 = vpop.trf.xlu0
  %v911 = vpop.trf.xlu0
  %v912 = vpop.trf.xlu0
  %913 = vxpose.xlu0.b32.start [1/16] %v878, 128
  %914 = vxpose.xlu0.b32.cont [2/16] 0.0, 128
  %915 = vxpose.xlu0.b32.cont [3/16] 0.0, 128
  %916 = vxpose.xlu0.b32.cont [4/16] 0.0, 128
  %917 = vxpose.xlu0.b32.cont [5/16] 0.0, 128
  %918 = vxpose.xlu0.b32.cont [6/16] 0.0, 128
  %919 = vxpose.xlu0.b32.cont [7/16] 0.0, 128
  %920 = vxpose.xlu0.b32.cont [8/16] 0.0, 128
  %921 = vxpose.xlu0.b32.cont [9/16] 0.0, 128
  %922 = vxpose.xlu0.b32.cont [10/16] 0.0, 128
  %923 = vxpose.xlu0.b32.cont [11/16] 0.0, 128
  %924 = vxpose.xlu0.b32.cont [12/16] 0.0, 128
  %925 = vxpose.xlu0.b32.cont [13/16] 0.0, 128
  %926 = vxpose.xlu0.b32.cont [14/16] 0.0, 128
  %927 = vxpose.xlu0.b32.cont [15/16] 0.0, 128
  %928 = vxpose.xlu0.b32.end [16/16] 0.0, 128
  %v929 = vpop.trf.xlu0
  %v930 = vpop.trf.xlu0
  %v931 = vpop.trf.xlu0
  %v932 = vpop.trf.xlu0
  %v933 = vpop.trf.xlu0
  %v934 = vpop.trf.xlu0
  %v935 = vpop.trf.xlu0
  %v936 = vpop.trf.xlu0
  %v937 = vpop.trf.xlu0
  %v938 = vpop.trf.xlu0
  %v939 = vpop.trf.xlu0
  %v940 = vpop.trf.xlu0
  %v941 = vpop.trf.xlu0
  %v942 = vpop.trf.xlu0
  %v943 = vpop.trf.xlu0
  %v944 = vpop.trf.xlu0
  %946 = vset.pattern.permute.xlu0 0
  %947 = vperm.xlu0 %946, %v897
  %v948 = vpop.permute.xlu0 %947
  %951 = vset.pattern.permute.xlu0 0
  %952 = vperm.xlu0 %951, %v898
  %v953 = vpop.permute.xlu0 %952
  %956 = vset.pattern.permute.xlu0 0
  %957 = vperm.xlu0 %956, %v929
  %v958 = vpop.permute.xlu0 %957
  %961 = vset.pattern.permute.xlu0 0
  %962 = vperm.xlu0 %961, %v930
  %v963 = vpop.permute.xlu0 %962
  %v965 = vmul.f32 %v541, %v948
  %v966 = vmul.f32 %v542, %v948
  %v967 = vmul.f32 %v543, %v953
  %v968 = vmul.f32 %v544, %v953
  %v969 = vmul.f32 %v545, %v958
  %v970 = vmul.f32 %v546, %v958
  %v971 = vmul.f32 %v547, %v963
  %v972 = vmul.f32 %v548, %v963
  %v973 = vmax.f32 %v965, %v967
  %v974 = vrot.slane %v973, 4
  %v975 = vmax.f32 %v973, %v974
  %v976 = vrot.slane %v975, 2
  %v977 = vmax.f32 %v975, %v976
  %v978 = vrot.slane %v977, 1
  %v979 = vmax.f32 %v977, %v978
  %v980 = vmax.f32 %v966, %v968
  %v981 = vrot.slane %v980, 4
  %v982 = vmax.f32 %v980, %v981
  %v983 = vrot.slane %v982, 2
  %v984 = vmax.f32 %v982, %v983
  %v985 = vrot.slane %v984, 1
  %v986 = vmax.f32 %v984, %v985
  %v987 = vmax.f32 %v969, %v971
  %v988 = vrot.slane %v987, 4
  %v989 = vmax.f32 %v987, %v988
  %v990 = vrot.slane %v989, 2
  %v991 = vmax.f32 %v989, %v990
  %v992 = vrot.slane %v991, 1
  %v993 = vmax.f32 %v991, %v992
  %v994 = vmax.f32 %v970, %v972
  %v995 = vrot.slane %v994, 4
  %v996 = vmax.f32 %v994, %v995
  %v997 = vrot.slane %v996, 2
  %v998 = vmax.f32 %v996, %v997
  %v999 = vrot.slane %v998, 1
  %v1000 = vmax.f32 %v998, %v999
  %1001 = vset.pattern.permute.xlu0 1
  %1002 = vperm.xlu0 %1001, %v897
  %v1003 = vpop.permute.xlu0 %1002
  %1005 = vset.pattern.permute.xlu0 1
  %1006 = vperm.xlu0 %1005, %v898
  %v1007 = vpop.permute.xlu0 %1006
  %1009 = vset.pattern.permute.xlu0 1
  %1010 = vperm.xlu0 %1009, %v929
  %v1011 = vpop.permute.xlu0 %1010
  %1013 = vset.pattern.permute.xlu0 1
  %1014 = vperm.xlu0 %1013, %v930
  %v1015 = vpop.permute.xlu0 %1014
  %v1017 = vmul.f32 %v541, %v1003
  %v1018 = vmul.f32 %v542, %v1003
  %v1019 = vmul.f32 %v543, %v1007
  %v1020 = vmul.f32 %v544, %v1007
  %v1021 = vmul.f32 %v545, %v1011
  %v1022 = vmul.f32 %v546, %v1011
  %v1023 = vmul.f32 %v547, %v1015
  %v1024 = vmul.f32 %v548, %v1015
  %v1025 = vmax.f32 %v1017, %v1019
  %v1026 = vrot.slane %v1025, 4
  %v1027 = vmax.f32 %v1025, %v1026
  %v1028 = vrot.slane %v1027, 2
  %v1029 = vmax.f32 %v1027, %v1028
  %v1030 = vrot.slane %v1029, 1
  %v1031 = vmax.f32 %v1029, %v1030
  %v1032 = vmax.f32 %v1018, %v1020
  %v1033 = vrot.slane %v1032, 4
  %v1034 = vmax.f32 %v1032, %v1033
  %v1035 = vrot.slane %v1034, 2
  %v1036 = vmax.f32 %v1034, %v1035
  %v1037 = vrot.slane %v1036, 1
  %v1038 = vmax.f32 %v1036, %v1037
  %v1039 = vmax.f32 %v1021, %v1023
  %v1040 = vrot.slane %v1039, 4
  %v1041 = vmax.f32 %v1039, %v1040
  %v1042 = vrot.slane %v1041, 2
  %v1043 = vmax.f32 %v1041, %v1042
  %v1044 = vrot.slane %v1043, 1
  %v1045 = vmax.f32 %v1043, %v1044
  %v1046 = vmax.f32 %v1022, %v1024
  %v1047 = vrot.slane %v1046, 4
  %v1048 = vmax.f32 %v1046, %v1047
  %v1049 = vrot.slane %v1048, 2
  %v1050 = vmax.f32 %v1048, %v1049
  %v1051 = vrot.slane %v1050, 1
  %v1052 = vmax.f32 %v1050, %v1051
  %1053 = vset.pattern.permute.xlu0 2
  %1054 = vperm.xlu0 %1053, %v897
  %v1055 = vpop.permute.xlu0 %1054
  %1057 = vset.pattern.permute.xlu0 2
  %1058 = vperm.xlu0 %1057, %v898
  %v1059 = vpop.permute.xlu0 %1058
  %1061 = vset.pattern.permute.xlu0 2
  %1062 = vperm.xlu0 %1061, %v929
  %v1063 = vpop.permute.xlu0 %1062
  %1065 = vset.pattern.permute.xlu0 2
  %1066 = vperm.xlu0 %1065, %v930
  %v1067 = vpop.permute.xlu0 %1066
  %v1069 = vmul.f32 %v541, %v1055
  %v1070 = vmul.f32 %v542, %v1055
  %v1071 = vmul.f32 %v543, %v1059
  %v1072 = vmul.f32 %v544, %v1059
  %v1073 = vmul.f32 %v545, %v1063
  %v1074 = vmul.f32 %v546, %v1063
  %v1075 = vmul.f32 %v547, %v1067
  %v1076 = vmul.f32 %v548, %v1067
  %v1077 = vmax.f32 %v1069, %v1071
  %v1078 = vrot.slane %v1077, 4
  %v1079 = vmax.f32 %v1077, %v1078
  %v1080 = vrot.slane %v1079, 2
  %v1081 = vmax.f32 %v1079, %v1080
  %v1082 = vrot.slane %v1081, 1
  %v1083 = vmax.f32 %v1081, %v1082
  %v1084 = vmax.f32 %v1070, %v1072
  %v1085 = vrot.slane %v1084, 4
  %v1086 = vmax.f32 %v1084, %v1085
  %v1087 = vrot.slane %v1086, 2
  %v1088 = vmax.f32 %v1086, %v1087
  %v1089 = vrot.slane %v1088, 1
  %v1090 = vmax.f32 %v1088, %v1089
  %v1091 = vmax.f32 %v1073, %v1075
  %v1092 = vrot.slane %v1091, 4
  %v1093 = vmax.f32 %v1091, %v1092
  %v1094 = vrot.slane %v1093, 2
  %v1095 = vmax.f32 %v1093, %v1094
  %v1096 = vrot.slane %v1095, 1
  %v1097 = vmax.f32 %v1095, %v1096
  %v1098 = vmax.f32 %v1074, %v1076
  %v1099 = vrot.slane %v1098, 4
  %v1100 = vmax.f32 %v1098, %v1099
  %v1101 = vrot.slane %v1100, 2
  %v1102 = vmax.f32 %v1100, %v1101
  %v1103 = vrot.slane %v1102, 1
  %v1104 = vmax.f32 %v1102, %v1103
  %vm1109 = vcmask 1041409
  %v1110 = vsel %vm1109, %v993, %v979
  %v1111 = vsel %vm1109, %v1000, %v986
  %vm1118 = vcmask 1043459
  %v1119 = vsel %vm1118, %v1045, %v1031
  %v1120 = vsel %vm1118, %v1052, %v1038
  %vm1127 = vcmask 1045509
  %v1128 = vsel %vm1127, %v1097, %v1083
  %v1129 = vsel %vm1127, %v1104, %v1090
  %vm1132 = vcmask 1041408
  %v1133 = vsel %vm1132, %v1110, %v1119
  %v1134 = vsel %vm1132, %v1111, %v1120
  %v1135 = vsel %vm406, %v1133, %v1128
  %v1136 = vsel %vm406, %v1134, %v1129
  %v1137 = vld [vmem:[%s9] sm:$0xff]
  %v1138 = vld [vmem:[%s9 + $0x8] sm:$0xff]
  %v1139 = vld [vmem:[%s9 + $0x10] sm:$0xff]
  %v1140 = vld [vmem:[%s9 + $0x18] sm:$0xff]
  %v1141 = vld [vmem:[%s9 + $0x20] sm:$0xff]
  %v1142 = vld [vmem:[%s9 + $0x28] sm:$0xff]
  %v1143 = vld [vmem:[%s9 + $0x30] sm:$0xff]
  %v1144 = vld [vmem:[%s9 + $0x38] sm:$0xff]
  %v1145 = vld [vmem:[%s9 + $0x40] sm:$0xff]
  %v1146 = vld [vmem:[%s9 + $0x48] sm:$0xff]
  %v1147 = vld [vmem:[%s9 + $0x50] sm:$0xff]
  %v1148 = vld [vmem:[%s9 + $0x58] sm:$0xff]
  %v1149 = vld [vmem:[%s9 + $0x60] sm:$0xff]
  %v1150 = vld [vmem:[%s9 + $0x68] sm:$0xff]
  %v1151 = vld [vmem:[%s9 + $0x70] sm:$0xff]
  %v1152 = vld [vmem:[%s9 + $0x78] sm:$0xff]
  %v1153 = vld [vmem:[%s9 + $0x80] sm:$0xff]
  %v1154 = vld [vmem:[%s9 + $0x88] sm:$0xff]
  %v1155 = vld [vmem:[%s9 + $0x90] sm:$0xff]
  %v1156 = vld [vmem:[%s9 + $0x98] sm:$0xff]
  %v1157 = vld [vmem:[%s9 + $0xa0] sm:$0xff]
  %v1158 = vld [vmem:[%s9 + $0xa8] sm:$0xff]
  %v1159 = vld [vmem:[%s9 + $0xb0] sm:$0xff]
  %v1160 = vld [vmem:[%s9 + $0xb8] sm:$0xff]
  %v1161 = vld [vmem:[%s9 + $0xc0] sm:$0xff]
  %v1162 = vld [vmem:[%s9 + $0xc8] sm:$0xff]
  %v1163 = vld [vmem:[%s9 + $0xd0] sm:$0xff]
  %v1164 = vld [vmem:[%s9 + $0xd8] sm:$0xff]
  %v1165 = vld [vmem:[%s9 + $0xe0] sm:$0xff]
  %v1166 = vld [vmem:[%s9 + $0xe8] sm:$0xff]
  %v1167 = vld [vmem:[%s9 + $0xf0] sm:$0xff]
  %v1168 = vld [vmem:[%s9 + $0xf8] sm:$0xff]
  %v1169 = vld [vmem:[#allocation2] sm:$0x1]
  %v1171 = vperm.slane %v1169, 0
  %1173 = vmatpush.msra.mxu0 %v1152
  %1174 = vmatpush.msra.mxu0 %v1151
  %1175 = vmatpush.msra.mxu0 %v1150
  %1176 = vmatpush.msra.mxu0 %v1149
  %1177 = vmatpush.msra.mxu0 %v1148
  %1178 = vmatpush.msra.mxu0 %v1147
  %1179 = vmatpush.msra.mxu0 %v1146
  %1180 = vmatpush.msra.mxu0 %v1145
  %1181 = vmatpush.msra.mxu0 %v1144
  %1182 = vmatpush.msra.mxu0 %v1143
  %1183 = vmatpush.msra.mxu0 %v1142
  %1184 = vmatpush.msra.mxu0 %v1141
  %1185 = vmatpush.msra.mxu0 %v1140
  %1186 = vmatpush.msra.mxu0 %v1139
  %1187 = vmatpush.msra.mxu0 %v1138
  %1188 = vmatpush.msra.mxu0 %v1137
  %1189 = vmatmul.f32.gmra.mxu0 %v1135
  %v1190 = vpop.f32.mrf.mxu0
  %v1191 = vadd.f32 %v1171, %v1190
  %1192 = vdwg.mxu0
  %1193 = vmatpush.msra.mxu0 %v1168
  %1194 = vmatpush.msra.mxu0 %v1167
  %1195 = vmatpush.msra.mxu0 %v1166
  %1196 = vmatpush.msra.mxu0 %v1165
  %1197 = vmatpush.msra.mxu0 %v1164
  %1198 = vmatpush.msra.mxu0 %v1163
  %1199 = vmatpush.msra.mxu0 %v1162
  %1200 = vmatpush.msra.mxu0 %v1161
  %1201 = vmatpush.msra.mxu0 %v1160
  %1202 = vmatpush.msra.mxu0 %v1159
  %1203 = vmatpush.msra.mxu0 %v1158
  %1204 = vmatpush.msra.mxu0 %v1157
  %1205 = vmatpush.msra.mxu0 %v1156
  %1206 = vmatpush.msra.mxu0 %v1155
  %1207 = vmatpush.msra.mxu0 %v1154
  %1208 = vmatpush.msra.mxu0 %v1153
  %1209 = vmatmul.f32.gmra.mxu0 %v1136
  %v1210 = vpop.f32.mrf.mxu0
  %v1211 = vadd.f32 %v1191, %v1210
  %1212 = vdwg.mxu0
  %v1213 = vtanh.pop %v1211
  %v1215 = vrot.slane %v1213, 2
  %v1217 = vadd.f32 %v1213, %v1215
  %v1218 = vrot.slane %v1213, 4
  %v1220 = vadd.f32 %v1217, %v1218
  %vm1221 = vcmask 1024
  %1222 = vst.msk [vmem:[%s11] sm:$0x3] %vm1221, %v1220
  // Predicated region
  $region46: #{imdb_forward.1} parent=0 // pred_check
    _
  $region47: #{imdb_forward.1} parent=0 // pred_check_branch
    %1224 = sbr.rel (0) target = $region49
  $region48: #{imdb_forward.1} parent=0 // pred_region
    _
  $region49: #{imdb_forward.1} parent=0 // pred_fallthru
    _
  // Predicated region
  $region50: #{imdb_forward.1} parent=0 // pred_check
    _
  $region51: #{imdb_forward.1} parent=0 // pred_check_branch
    %1226 = sbr.rel (0) target = $region53
  $region52: #{imdb_forward.1} parent=0 // pred_region
    _
  $region53: #{imdb_forward.1} parent=0 // pred_fallthru
    _
  // Predicated region
  $region54: #{imdb_forward.1} parent=0 // pred_check
    _
  $region55: #{imdb_forward.1} parent=0 // pred_check_branch
    %1228 = sbr.rel (0) target = $region57
  $region56: #{imdb_forward.1} parent=0 // pred_region
    _
  $region57: #{imdb_forward.1} parent=0 // pred_fallthru
    _
  // Predicated region
  $region58: #{imdb_forward.1} parent=0 // pred_check
    _
  $region59: #{imdb_forward.1} parent=0 // pred_check_branch
    %1230 = sbr.rel (0) target = $region61
  $region60: #{imdb_forward.1} parent=0 // pred_region
    _
  $region61: #{imdb_forward.1} parent=0 // pred_fallthru
    _

</llo_original>
